<compile_context>
chip_gen: v7x
topology: tpu7x:2x2x1
jax: 0.10.0
libtpu: 0.0.40
codegen_flags: <defaults>
</compile_context>

<pallas_src>
import functools

import jax
import jax.numpy as jnp
from jax.experimental import pallas as pl
from jax.experimental.pallas import tpu as pltpu


def _round_up(n, m):
    return ((n + m - 1) // m) * m


def _pick_tile(n, max_tile):
    """Whole (rounded-up-to-8) extent if it fits, else max_tile.

    max_tile must be a multiple of 128 so that multi-chunk grids keep the
    lane-dim blocks (8,128)-compliant; single-chunk tiles only need % 8 == 0
    because they then equal the padded array extent.
    """
    r = _round_up(n, 8)
    return r if r <= max_tile else max_tile


# ----------------------------------------------------------------------------
# Kernel 1: fused PointNet backbone (3 -> 64 -> 128 -> 256 shared MLP)
#           + per-chunk sum pool (two-stage mean reduction)
# ----------------------------------------------------------------------------
def _backbone_pool_kernel(x_ref, w0_ref, b0_ref, w1_ref, b1_ref, w2_ref, b2_ref,
                          o_ref, *, n_valid, tile, need_mask):
    # x_ref: (TM, 3) f32   w0_ref: (3, C0) f32 (per-batch, rotation folded in)
    # w1/w2: bf16          o_ref: (8, C2) f32 partial-sum block for this chunk
    x = x_ref[...]
    w0 = w0_ref[...]
    # K=3 layer as 3 broadcast FMAs on the VPU (avoid padding K=3 -> 128).
    h = (x[:, 0:1] * w0[0:1, :]
         + x[:, 1:2] * w0[1:2, :]
         + x[:, 2:3] * w0[2:3, :]
         + b0_ref[...])
    h = jnp.maximum(h, 0.0).astype(jnp.bfloat16)
    h = jnp.dot(h, w1_ref[...], preferred_element_type=jnp.float32) + b1_ref[...]
    h = jnp.maximum(h, 0.0).astype(jnp.bfloat16)
    h = jnp.dot(h, w2_ref[...], preferred_element_type=jnp.float32) + b2_ref[...]
    h = jnp.maximum(h, 0.0)
    if need_mask:
        # Zero padded tail rows so they don't pollute the pooled sum.
        rows = (jax.lax.broadcasted_iota(jnp.int32, (tile, 1), 0)
                + pl.program_id(1) * tile)
        h = jnp.where(rows < n_valid, h, 0.0)
    partial = jnp.sum(h, axis=0, keepdims=True)            # (1, C2), lane-dense
    # Replicate into the 8-row block (keeps the out block (8,128)-compliant);
    # only row 0 of each chunk is read back outside.
    o_ref[...] = jnp.broadcast_to(partial, o_ref.shape)


def fused_pointnet_backbone(x, w0e, b0, w1, b1, w2, b2, *, max_tile=1024):
    """x: [B,N,3] f32; w0e: [B,3,C0] per-batch layer-0 weight. Returns [B,C2]."""
    B, N, _ = x.shape
    C0, C1, C2 = w0e.shape[-1], w1.shape[-1], w2.shape[-1]
    TM = _pick_tile(N, max_tile)
    n_chunks = pl.cdiv(N, TM)
    N_pad = n_chunks * TM
    if N_pad != N:
        x = jnp.pad(x, ((0, 0), (0, N_pad - N), (0, 0)))

    out = pl.pallas_call(
        functools.partial(_backbone_pool_kernel,
                          n_valid=N, tile=TM, need_mask=(N_pad != N)),
        out_shape=jax.ShapeDtypeStruct((B, n_chunks * 8, C2), jnp.float32),
        grid_spec=pltpu.PrefetchScalarGridSpec(
            num_scalar_prefetch=0,
            grid=(B, n_chunks),
            in_specs=[
                pl.BlockSpec((None, TM, 3), lambda b, m: (b, m, 0)),
                pl.BlockSpec((None, 3, C0), lambda b, m: (b, 0, 0)),
                pl.BlockSpec((1, C0), lambda b, m: (0, 0)),
                pl.BlockSpec((C0, C1), lambda b, m: (0, 0)),
                pl.BlockSpec((1, C1), lambda b, m: (0, 0)),
                pl.BlockSpec((C1, C2), lambda b, m: (0, 0)),
                pl.BlockSpec((1, C2), lambda b, m: (0, 0)),
            ],
            out_specs=pl.BlockSpec((None, 8, C2), lambda b, m: (b, m, 0)),
        ),
        compiler_params=pltpu.CompilerParams(
            dimension_semantics=("parallel", "parallel"),
            vmem_limit_bytes=32 * 1024 * 1024),
    )(x, w0e, b0, w1, b1, w2, b2)

    # Stage 2 of the mean pool: tiny XLA reduce over chunks + 1/N scale.
    partials = out.reshape(B, n_chunks, 8, C2)[:, :, 0, :]
    return partials.sum(axis=1) * (1.0 / N)


# ----------------------------------------------------------------------------
# Kernel 2: fused decoder MLP (259 -> 256 -> 256 -> 1), fully transposed
#           (features on sublanes, query points on lanes -> lane-dense output)
# ----------------------------------------------------------------------------
def _decoder_kernel(pt_ref, wpT_ref, zbT_ref, w1t_ref, b1T_ref, w2c_ref, b2_ref,
                    o_ref):
    pt = pt_ref[...]                    # (3, TM) f32 (query points, transposed)
    wpT = wpT_ref[...]                  # (H, 3) f32 (rotation folded in)
    # Layer 0: p-part as 3 broadcast FMAs; z-part + bias precomputed in zbT.
    h = (wpT[:, 0:1] * pt[0:1, :]
         + wpT[:, 1:2] * pt[1:2, :]
         + wpT[:, 2:3] * pt[2:3, :]
         + zbT_ref[...])                # (H, TM)
    h = jnp.maximum(h, 0.0).astype(jnp.bfloat16)
    h = jnp.dot(w1t_ref[...], h, preferred_element_type=jnp.float32) + b1T_ref[...]
    h = jnp.maximum(h, 0.0)
    # Final Linear(H, 1) as a sublane reduction -> lane-dense (1, TM) row store
    # (no N=1->128 padded matmul, no last-dim-1 masked stores).
    o_ref[...] = jnp.sum(h * w2c_ref[...], axis=0, keepdims=True) + b2_ref[...]


def fused_decoder(p, wpT_eff, zbT, w1t, b1T, w2c, b2, *, max_tile=512):
    """p: [B,Np,3]; wpT_eff: [B,H,3]; zbT: [B,H,1]. Returns [B,Np,1] f32."""
    B, Np, _ = p.shape
    H = w1t.shape[0]
    TM = _pick_tile(Np, max_tile)
    n_chunks = pl.cdiv(Np, TM)
    Np_pad = n_chunks * TM

    pt = jnp.swapaxes(p, 1, 2)                      # (B, 3, Np)
    if Np_pad != Np:
        pt = jnp.pad(pt, ((0, 0), (0, 0), (0, Np_pad - Np)))

    out = pl.pallas_call(
        _decoder_kernel,
        out_shape=jax.ShapeDtypeStruct((B, 1, Np_pad), jnp.float32),
        grid_spec=pltpu.PrefetchScalarGridSpec(
            num_scalar_prefetch=0,
            grid=(B, n_chunks),
            in_specs=[
                pl.BlockSpec((None, 3, TM), lambda b, m: (b, 0, m)),
                pl.BlockSpec((None, H, 3), lambda b, m: (b, 0, 0)),
                pl.BlockSpec((None, H, 1), lambda b, m: (b, 0, 0)),
                pl.BlockSpec((H, H), lambda b, m: (0, 0)),
                pl.BlockSpec((H, 1), lambda b, m: (0, 0)),
                pl.BlockSpec((H, 1), lambda b, m: (0, 0)),
                pl.BlockSpec((1, 1), lambda b, m: (0, 0)),
            ],
            out_specs=pl.BlockSpec((None, 1, TM), lambda b, m: (b, 0, m)),
        ),
        compiler_params=pltpu.CompilerParams(
            dimension_semantics=("parallel", "parallel"),
            vmem_limit_bytes=32 * 1024 * 1024),
    )(pt, wpT_eff, zbT, w1t, b1T, w2c, b2)

    # Drop padded query columns; restore the [B, Np, 1] layout of the module.
    return jnp.swapaxes(out, 1, 2)[:, :Np, :]


# ----------------------------------------------------------------------------
# Parameter construction (deterministic, synthetic, packed kernel-ready at init)
# ----------------------------------------------------------------------------
def _init_linear(key, fan_in, fan_out):
    kw, kb = jax.random.split(key)
    scale = 1.0 / jnp.sqrt(jnp.float32(fan_in))
    w = jax.random.uniform(kw, (fan_in, fan_out), jnp.float32, -scale, scale)
    b = jax.random.uniform(kb, (fan_out,), jnp.float32, -scale, scale)
    return w, b


def _init_backbone(key):
    k0, k1, k2 = jax.random.split(key, 3)
    w0, b0 = _init_linear(k0, 3, 64)
    w1, b1 = _init_linear(k1, 64, 128)
    w2, b2 = _init_linear(k2, 128, 256)
    return {
        "w0": w0, "b0": b0.reshape(1, -1),
        "w1": w1.astype(jnp.bfloat16), "b1": b1.reshape(1, -1),
        "w2": w2.astype(jnp.bfloat16), "b2": b2.reshape(1, -1),
    }


def init_params(key, hidden_dim=256):
    keys = jax.random.split(key, 12)
    p = {}
    p["so3_bb"] = _init_backbone(keys[0])           # PoseNet tiny backbone
    p["bb"] = _init_backbone(keys[1])               # main backbone
    p["fc_trans"] = _init_linear(keys[2], 256, 3)
    # mu / log_var heads: layer-0 weights concatenated along N (single GEMM).
    w_mu0, b_mu0 = _init_linear(keys[3], 256, 256)
    w_lv0, b_lv0 = _init_linear(keys[4], 256, 256)
    p["head0_w"] = jnp.concatenate([w_mu0, w_lv0], axis=1)   # (256, 512)
    p["head0_b"] = jnp.concatenate([b_mu0, b_lv0], axis=0)   # (512,)
    p["mu1"] = _init_linear(keys[5], 256, 256)
    p["lv1"] = _init_linear(keys[6], 256, 256)
    p["temp_feature"] = jax.random.normal(keys[7], (1, 256), jnp.float32)
    # Decoder: layer-0 split into z-part / p-part; layers 1/2 stored transposed
    # (kernel-ready for the lanes=points orientation).
    w_d0, b_d0 = _init_linear(keys[8], hidden_dim + 3, hidden_dim)
    p["dec_w0z"] = w_d0[:hidden_dim]                # (256, 256)
    p["dec_w0p"] = w_d0[hidden_dim:]                # (3, 256)
    p["dec_b0"] = b_d0                              # (256,)
    w_d1, b_d1 = _init_linear(keys[9], hidden_dim, hidden_dim)
    p["dec_w1t"] = jnp.transpose(w_d1).astype(jnp.bfloat16)  # (256, 256)
    p["dec_b1"] = b_d1.reshape(-1, 1)               # (256, 1)
    w_d2, b_d2 = _init_linear(keys[10], hidden_dim, 1)
    p["dec_w2c"] = w_d2                             # (256, 1)
    p["dec_b2"] = b_d2.reshape(1, 1)                # (1, 1)
    return p


# ----------------------------------------------------------------------------
# Forward pass (glue in JAX, heavy work in the two fused Pallas kernels)
# ----------------------------------------------------------------------------
def euler_angles_to_rotation_matrix_batch(angles):
    """angles: [B, 3] (yaw, pitch, roll) -> R = R_x @ R_y @ R_z, [B, 3, 3]."""
    yaw, pitch, roll = angles[:, 0], angles[:, 1], angles[:, 2]
    c, s = jnp.cos, jnp.sin
    z = jnp.zeros_like(yaw)
    o = jnp.ones_like(yaw)
    R_x = jnp.stack([jnp.stack([o, z, z], -1),
                     jnp.stack([z, c(roll), -s(roll)], -1),
                     jnp.stack([z, s(roll), c(roll)], -1)], axis=1)
    R_y = jnp.stack([jnp.stack([c(pitch), z, s(pitch)], -1),
                     jnp.stack([z, o, z], -1),
                     jnp.stack([-s(pitch), z, c(pitch)], -1)], axis=1)
    R_z = jnp.stack([jnp.stack([c(yaw), -s(yaw), z], -1),
                     jnp.stack([s(yaw), c(yaw), z], -1),
                     jnp.stack([z, z, o], -1)], axis=1)
    return jnp.matmul(jnp.matmul(R_x, R_y), R_z)


def pointnet2_wpos_forward(params, p, x, eps_key):
    """Mirrors PointNet2_wpos.forward(p, x) -> (out, mu, log_var)."""
    B = x.shape[0]
    H = params["temp_feature"].shape[-1]

    # ---- PoseNet (self.so3): tiny backbone -> mean pool -> fc_trans -> euler->R
    so3 = params["so3_bb"]
    w0e_so3 = jnp.broadcast_to(so3["w0"][None], (B,) + so3["w0"].shape)
    gf_so3 = fused_pointnet_backbone(x, w0e_so3, so3["b0"], so3["w1"], so3["b1"],
                                     so3["w2"], so3["b2"])                 # [B, 256]
    # 2-row matmul: plain XLA dot (a pallas_call here is pure launch overhead).
    angles = gf_so3 @ params["fc_trans"][0] + params["fc_trans"][1]        # [B, 3]
    R = euler_angles_to_rotation_matrix_batch(angles)                      # [B, 3, 3]
    R_inv = jax.lax.stop_gradient(jnp.swapaxes(R, 1, 2))                   # transpose(2,1).detach()

    # ---- encode(): x is rotated by R_inv; fold the rotation into layer-0 weight
    #      (x @ R_inv) @ W0 == x @ (R_inv @ W0) -> x_rot never materialized.
    bb = params["bb"]
    w0e_main = jnp.einsum("bij,jc->bic", R_inv, bb["w0"])                  # [B, 3, 64]
    gf = fused_pointnet_backbone(x, w0e_main, bb["b0"], bb["w1"], bb["b1"],
                                 bb["w2"], bb["b2"])                       # [B, 256]

    # mu / log_var heads (layer-0 fused into one [256,512] GEMM; B=2 rows -> XLA).
    h = gf @ params["head0_w"] + params["head0_b"]
    h = jnp.where(h > 0.0, h, 0.01 * h)                                    # LeakyReLU
    mu = h[:, :H] @ params["mu1"][0] + params["mu1"][1]
    log_var = h[:, H:] @ params["lv1"][0] + params["lv1"][1]

    # reparameterize (training mode) + temp_feature embedding
    std = jnp.exp(0.5 * log_var)
    eps = jax.random.normal(eps_key, std.shape, jnp.float32)
    z = eps * std + mu + params["temp_feature"]

    # ---- decode(): z-part of decoder layer 0 computed once per batch (+bias),
    #      rotation folded into the (transposed) p-part weight; rest fused.
    zb = z @ params["dec_w0z"] + params["dec_b0"]                          # [B, 256]
    wp_eff = jnp.einsum("bij,jc->bic", R_inv, params["dec_w0p"])           # [B, 3, 256]
    out = fused_decoder(p, jnp.swapaxes(wp_eff, 1, 2), zb[:, :, None],
                        params["dec_w1t"], params["dec_b1"],
                        params["dec_w2c"], params["dec_b2"])               # [B, Np, 1]
    return out, mu, log_var


# ----------------------------------------------------------------------------
# Pure-JAX f32 reference (same approximation of the module) for validation.
# ----------------------------------------------------------------------------
def _reference_forward(params, p, x, eps_key):
    B = x.shape[0]
    H = params["temp_feature"].shape[-1]

    def backbone_ref(pts, bb):
        h = jnp.maximum(pts @ bb["w0"] + bb["b0"], 0.0)
        h = jnp.maximum(h @ bb["w1"].astype(jnp.float32) + bb["b1"], 0.0)
        h = jnp.maximum(h @ bb["w2"].astype(jnp.float32) + bb["b2"], 0.0)
        return h.mean(axis=1)

    gf_so3 = backbone_ref(x, params["so3_bb"])
    angles = gf_so3 @ params["fc_trans"][0] + params["fc_trans"][1]
    R = euler_angles_to_rotation_matrix_batch(angles)
    R_inv = jax.lax.stop_gradient(jnp.swapaxes(R, 1, 2))

    x_rot = jnp.einsum("bnj,bjk->bnk", x, R_inv)
    gf = backbone_ref(x_rot, params["bb"])

    h = gf @ params["head0_w"] + params["head0_b"]
    h = jnp.where(h > 0.0, h, 0.01 * h)
    mu = h[:, :H] @ params["mu1"][0] + params["mu1"][1]
    log_var = h[:, H:] @ params["lv1"][0] + params["lv1"][1]

    std = jnp.exp(0.5 * log_var)
    eps = jax.random.normal(eps_key, std.shape, jnp.float32)
    z = eps * std + mu + params["temp_feature"]

    p_rot = jnp.einsum("bnj,bjk->bnk", p, R_inv)
    Np = p.shape[1]
    feat = jnp.concatenate(
        [jnp.broadcast_to(z[:, None, :], (B, Np, H)), p_rot], axis=-1)
    w0_full = jnp.concatenate([params["dec_w0z"], params["dec_w0p"]], axis=0)
    hd = jnp.maximum(feat @ w0_full + params["dec_b0"], 0.0)
    hd = jnp.maximum(hd @ params["dec_w1t"].astype(jnp.float32).T
                     + params["dec_b1"].reshape(-1), 0.0)
    out = hd @ params["dec_w2c"] + params["dec_b2"][0, 0]
    return out, mu, log_var


# ----------------------------------------------------------------------------
if __name__ == "__main__":
    key = jax.random.PRNGKey(0)
    k_param, k_x, k_p, k_eps, k_x2, k_p2 = jax.random.split(key, 6)

    params = init_params(k_param, hidden_dim=256)
    forward = jax.jit(pointnet2_wpos_forward)

    # Case 1: small shapes consistent with the module (res=64 style inputs).
    B, N_pts, N_query = 2, 64, 64
    x = jax.random.normal(k_x, (B, N_pts, 3), jnp.float32)      # input point cloud
    p = jax.random.normal(k_p, (B, N_query, 3), jnp.float32)    # query points
    out, mu, log_var = forward(params, p, x, k_eps)
    jax.block_until_ready((out, mu, log_var))
    assert out.shape == (B, N_query, 1)
    assert mu.shape == (B, 256) and log_var.shape == (B, 256)
    assert bool(jnp.all(jnp.isfinite(out))) and bool(jnp.all(jnp.isfinite(mu)))
    r_out, r_mu, r_lv = _reference_forward(params, p, x, k_eps)
    assert bool(jnp.allclose(out, r_out, rtol=5e-2, atol=5e-2))
    assert bool(jnp.allclose(mu, r_mu, rtol=5e-2, atol=5e-2))
    assert bool(jnp.allclose(log_var, r_lv, rtol=5e-2, atol=5e-2))

    # Case 2: non-tile-aligned sizes -> exercises cdiv grids, masked tail rows
    # in the pooled backbone sum and padded/sliced decoder queries.
    B2, N2, Nq2 = 1, 2000, 700
    x2 = jax.random.normal(k_x2, (B2, N2, 3), jnp.float32)
    p2 = jax.random.normal(k_p2, (B2, Nq2, 3), jnp.float32)
    out2, mu2, lv2 = forward(params, p2, x2, k_eps)
    jax.block_until_ready((out2, mu2, lv2))
    assert out2.shape == (B2, Nq2, 1)
    r_out2, r_mu2, r_lv2 = _reference_forward(params, p2, x2, k_eps)
    assert bool(jnp.allclose(out2, r_out2, rtol=5e-2, atol=5e-2))
    assert bool(jnp.allclose(mu2, r_mu2, rtol=5e-2, atol=5e-2))
    assert bool(jnp.all(jnp.isfinite(out2)))

    print("KERNEL_OK")
</pallas_src>

<mosaic_0001>
module attributes {stable_mosaic.version = 11 : i64} {
  func.func @_backbone_pool_kernel(%arg0: i32, %arg1: i32, %arg2: memref<1x64x3xf32, #tpu.memory_space<vmem>>, %arg3: memref<1x3x64xf32, #tpu.memory_space<vmem>>, %arg4: memref<1x64xf32, #tpu.memory_space<vmem>>, %arg5: memref<64x128xbf16, #tpu.memory_space<vmem>>, %arg6: memref<1x128xf32, #tpu.memory_space<vmem>>, %arg7: memref<128x256xbf16, #tpu.memory_space<vmem>>, %arg8: memref<1x256xf32, #tpu.memory_space<vmem>>, %arg9: memref<1x8x256xf32, #tpu.memory_space<vmem>>) attributes {dimension_semantics = [#tpu.dimension_semantics<parallel>, #tpu.dimension_semantics<parallel>], iteration_bounds = array<i64: 2, 1>, scalar_prefetch = 0 : i64, scratch_operands = 0 : i64, tpu.core_type = #tpu.core_type<tc>, window_params = [{transform_indices = @transform_0, window_bounds = array<i64: 1, 64, 3>}, {transform_indices = @transform_1, window_bounds = array<i64: 1, 3, 64>}, {pipeline_mode = #tpu.pipeline_mode<synchronous>, transform_indices = @transform_2, window_bounds = array<i64: 1, 64>}, {pipeline_mode = #tpu.pipeline_mode<synchronous>, transform_indices = @transform_3, window_bounds = array<i64: 64, 128>}, {pipeline_mode = #tpu.pipeline_mode<synchronous>, transform_indices = @transform_4, window_bounds = array<i64: 1, 128>}, {pipeline_mode = #tpu.pipeline_mode<synchronous>, transform_indices = @transform_5, window_bounds = array<i64: 128, 256>}, {pipeline_mode = #tpu.pipeline_mode<synchronous>, transform_indices = @transform_6, window_bounds = array<i64: 1, 256>}, {transform_indices = @transform_7, window_bounds = array<i64: 1, 8, 256>}]} {
    %c0 = arith.constant 0 : index
    %c0_0 = arith.constant 0 : index
    %c0_1 = arith.constant 0 : index
    %0 = vector.load %arg2[%c0, %c0_0, %c0_1] : memref<1x64x3xf32, #tpu.memory_space<vmem>>, vector<1x64x3xf32>
    %1 = vector.shape_cast %0 : vector<1x64x3xf32> to vector<64x3xf32>
    %c0_2 = arith.constant 0 : index
    %c0_3 = arith.constant 0 : index
    %c0_4 = arith.constant 0 : index
    %2 = vector.load %arg3[%c0_2, %c0_3, %c0_4] : memref<1x3x64xf32, #tpu.memory_space<vmem>>, vector<1x3x64xf32>
    %3 = vector.shape_cast %2 : vector<1x3x64xf32> to vector<3x64xf32>
    %4 = vector.extract_strided_slice %1 {offsets = [0, 0], sizes = [64, 1], strides = [1, 1]} : vector<64x3xf32> to vector<64x1xf32>
    %5 = vector.extract_strided_slice %3 {offsets = [0, 0], sizes = [1, 64], strides = [1, 1]} : vector<3x64xf32> to vector<1x64xf32>
    %6 = vector.broadcast %4 : vector<64x1xf32> to vector<64x64xf32>
    %7 = vector.broadcast %5 : vector<1x64xf32> to vector<64x64xf32>
    %8 = arith.mulf %6, %7 : vector<64x64xf32>
    %9 = vector.extract_strided_slice %1 {offsets = [0, 1], sizes = [64, 1], strides = [1, 1]} : vector<64x3xf32> to vector<64x1xf32>
    %10 = vector.extract_strided_slice %3 {offsets = [1, 0], sizes = [1, 64], strides = [1, 1]} : vector<3x64xf32> to vector<1x64xf32>
    %11 = vector.broadcast %9 : vector<64x1xf32> to vector<64x64xf32>
    %12 = vector.broadcast %10 : vector<1x64xf32> to vector<64x64xf32>
    %13 = arith.mulf %11, %12 : vector<64x64xf32>
    %14 = arith.addf %8, %13 : vector<64x64xf32>
    %15 = vector.extract_strided_slice %1 {offsets = [0, 2], sizes = [64, 1], strides = [1, 1]} : vector<64x3xf32> to vector<64x1xf32>
    %16 = vector.extract_strided_slice %3 {offsets = [2, 0], sizes = [1, 64], strides = [1, 1]} : vector<3x64xf32> to vector<1x64xf32>
    %17 = vector.broadcast %15 : vector<64x1xf32> to vector<64x64xf32>
    %18 = vector.broadcast %16 : vector<1x64xf32> to vector<64x64xf32>
    %19 = arith.mulf %17, %18 : vector<64x64xf32>
    %20 = arith.addf %14, %19 : vector<64x64xf32>
    %c0_5 = arith.constant 0 : index
    %c0_6 = arith.constant 0 : index
    %21 = vector.load %arg4[%c0_5, %c0_6] : memref<1x64xf32, #tpu.memory_space<vmem>>, vector<1x64xf32>
    %22 = vector.broadcast %21 : vector<1x64xf32> to vector<64x64xf32>
    %23 = arith.addf %20, %22 : vector<64x64xf32>
    %cst = arith.constant 0.000000e+00 : f32
    %24 = vector.broadcast %cst : f32 to vector<64x64xf32>
    %25 = arith.maximumf %23, %24 : vector<64x64xf32>
    %26 = arith.truncf %25 : vector<64x64xf32> to vector<64x64xbf16>
    %c0_7 = arith.constant 0 : index
    %c0_8 = arith.constant 0 : index
    %27 = vector.load %arg5[%c0_7, %c0_8] : memref<64x128xbf16, #tpu.memory_space<vmem>>, vector<64x128xbf16>
    %cst_9 = arith.constant dense<0.000000e+00> : vector<64x128xf32>
    %28 = tpu.matmul %26, %27, %cst_9 {dimension_numbers = #tpu.dot_dimension_numbers<[1], [0], [0], [1], [0, 0, 1, 1], [], []>} : vector<64x64xbf16>, vector<64x128xbf16>, vector<64x128xf32> -> vector<64x128xf32>
    %c0_10 = arith.constant 0 : index
    %c0_11 = arith.constant 0 : index
    %29 = vector.load %arg6[%c0_10, %c0_11] : memref<1x128xf32, #tpu.memory_space<vmem>>, vector<1x128xf32>
    %30 = vector.broadcast %29 : vector<1x128xf32> to vector<64x128xf32>
    %31 = arith.addf %28, %30 : vector<64x128xf32>
    %cst_12 = arith.constant 0.000000e+00 : f32
    %32 = vector.broadcast %cst_12 : f32 to vector<64x128xf32>
    %33 = arith.maximumf %31, %32 : vector<64x128xf32>
    %34 = arith.truncf %33 : vector<64x128xf32> to vector<64x128xbf16>
    %c0_13 = arith.constant 0 : index
    %c0_14 = arith.constant 0 : index
    %35 = vector.load %arg7[%c0_13, %c0_14] : memref<128x256xbf16, #tpu.memory_space<vmem>>, vector<128x256xbf16>
    %cst_15 = arith.constant dense<0.000000e+00> : vector<64x256xf32>
    %36 = tpu.matmul %34, %35, %cst_15 {dimension_numbers = #tpu.dot_dimension_numbers<[1], [0], [0], [1], [0, 0, 1, 1], [], []>} : vector<64x128xbf16>, vector<128x256xbf16>, vector<64x256xf32> -> vector<64x256xf32>
    %c0_16 = arith.constant 0 : index
    %c0_17 = arith.constant 0 : index
    %37 = vector.load %arg8[%c0_16, %c0_17] : memref<1x256xf32, #tpu.memory_space<vmem>>, vector<1x256xf32>
    %38 = vector.broadcast %37 : vector<1x256xf32> to vector<64x256xf32>
    %39 = arith.addf %36, %38 : vector<64x256xf32>
    %cst_18 = arith.constant 0.000000e+00 : f32
    %40 = vector.broadcast %cst_18 : f32 to vector<64x256xf32>
    %41 = arith.maximumf %39, %40 : vector<64x256xf32>
    %cst_19 = arith.constant dense<0.000000e+00> : vector<256xf32>
    %42 = vector.multi_reduction <add>, %41, %cst_19 [0] : vector<64x256xf32> to vector<256xf32>
    %43 = vector.shape_cast %42 : vector<256xf32> to vector<1x256xf32>
    %44 = vector.shape_cast %43 : vector<1x256xf32> to vector<1x256xf32>
    %45 = vector.broadcast %44 : vector<1x256xf32> to vector<8x256xf32>
    %c0_20 = arith.constant 0 : index
    %c0_21 = arith.constant 0 : index
    %c0_22 = arith.constant 0 : index
    %46 = vector.load %arg9[%c0_20, %c0_21, %c0_22] : memref<1x8x256xf32, #tpu.memory_space<vmem>>, vector<1x8x256xf32>
    %47 = vector.shape_cast %46 : vector<1x8x256xf32> to vector<8x256xf32>
    %48 = vector.shape_cast %45 : vector<8x256xf32> to vector<1x8x256xf32>
    tpu.vector_store %arg9[%c0_20, %c0_21, %c0_22], %48 {strides = array<i32>} : memref<1x8x256xf32, #tpu.memory_space<vmem>>, vector<1x8x256xf32>,
    return
  }
  func.func @transform_0(%arg0: i32, %arg1: i32) -> (i32, i32, i32) {
    %c0_i32 = arith.constant 0 : i32
    %c0_i32_0 = arith.constant 0 : i32
    return %arg0, %arg1, %c0_i32 : i32, i32, i32
  }
  func.func @transform_1(%arg0: i32, %arg1: i32) -> (i32, i32, i32) {
    %c0_i32 = arith.constant 0 : i32
    %c0_i32_0 = arith.constant 0 : i32
    %c0_i32_1 = arith.constant 0 : i32
    return %arg0, %c0_i32, %c0_i32_0 : i32, i32, i32
  }
  func.func @transform_2(%arg0: i32, %arg1: i32) -> (i32, i32) {
    %c0_i32 = arith.constant 0 : i32
    %c0_i32_0 = arith.constant 0 : i32
    %c0_i32_1 = arith.constant 0 : i32
    return %c0_i32, %c0_i32_0 : i32, i32
  }
  func.func @transform_3(%arg0: i32, %arg1: i32) -> (i32, i32) {
    %c0_i32 = arith.constant 0 : i32
    %c0_i32_0 = arith.constant 0 : i32
    %c0_i32_1 = arith.constant 0 : i32
    return %c0_i32, %c0_i32_0 : i32, i32
  }
  func.func @transform_4(%arg0: i32, %arg1: i32) -> (i32, i32) {
    %c0_i32 = arith.constant 0 : i32
    %c0_i32_0 = arith.constant 0 : i32
    %c0_i32_1 = arith.constant 0 : i32
    return %c0_i32, %c0_i32_0 : i32, i32
  }
  func.func @transform_5(%arg0: i32, %arg1: i32) -> (i32, i32) {
    %c0_i32 = arith.constant 0 : i32
    %c0_i32_0 = arith.constant 0 : i32
    %c0_i32_1 = arith.constant 0 : i32
    return %c0_i32, %c0_i32_0 : i32, i32
  }
  func.func @transform_6(%arg0: i32, %arg1: i32) -> (i32, i32) {
    %c0_i32 = arith.constant 0 : i32
    %c0_i32_0 = arith.constant 0 : i32
    %c0_i32_1 = arith.constant 0 : i32
    return %c0_i32, %c0_i32_0 : i32, i32
  }
  func.func @transform_7(%arg0: i32, %arg1: i32) -> (i32, i32, i32) {
    %c0_i32 = arith.constant 0 : i32
    %c0_i32_0 = arith.constant 0 : i32
    return %arg0, %arg1, %c0_i32 : i32, i32, i32
  }
}

module attributes {stable_mosaic.version = 11 : i64} {
  func.func @_decoder_kernel(%arg0: i32, %arg1: i32, %arg2: memref<1x3x64xf32, #tpu.memory_space<vmem>>, %arg3: memref<1x256x3xf32, #tpu.memory_space<vmem>>, %arg4: memref<1x256x1xf32, #tpu.memory_space<vmem>>, %arg5: memref<256x256xbf16, #tpu.memory_space<vmem>>, %arg6: memref<256x1xf32, #tpu.memory_space<vmem>>, %arg7: memref<256x1xf32, #tpu.memory_space<vmem>>, %arg8: memref<1x1xf32, #tpu.memory_space<vmem>>, %arg9: memref<1x1x64xf32, #tpu.memory_space<vmem>>) attributes {dimension_semantics = [#tpu.dimension_semantics<parallel>, #tpu.dimension_semantics<parallel>], iteration_bounds = array<i64: 2, 1>, scalar_prefetch = 0 : i64, scratch_operands = 0 : i64, tpu.core_type = #tpu.core_type<tc>, window_params = [{transform_indices = @transform_0, window_bounds = array<i64: 1, 3, 64>}, {transform_indices = @transform_1, window_bounds = array<i64: 1, 256, 3>}, {transform_indices = @transform_2, window_bounds = array<i64: 1, 256, 1>}, {pipeline_mode = #tpu.pipeline_mode<synchronous>, transform_indices = @transform_3, window_bounds = array<i64: 256, 256>}, {pipeline_mode = #tpu.pipeline_mode<synchronous>, transform_indices = @transform_4, window_bounds = array<i64: 256, 1>}, {pipeline_mode = #tpu.pipeline_mode<synchronous>, transform_indices = @transform_5, window_bounds = array<i64: 256, 1>}, {pipeline_mode = #tpu.pipeline_mode<synchronous>, transform_indices = @transform_6, window_bounds = array<i64: 1, 1>}, {transform_indices = @transform_7, window_bounds = array<i64: 1, 1, 64>}]} {
    %c0 = arith.constant 0 : index
    %c0_0 = arith.constant 0 : index
    %c0_1 = arith.constant 0 : index
    %0 = vector.load %arg2[%c0, %c0_0, %c0_1] : memref<1x3x64xf32, #tpu.memory_space<vmem>>, vector<1x3x64xf32>
    %1 = vector.shape_cast %0 : vector<1x3x64xf32> to vector<3x64xf32>
    %c0_2 = arith.constant 0 : index
    %c0_3 = arith.constant 0 : index
    %c0_4 = arith.constant 0 : index
    %2 = vector.load %arg3[%c0_2, %c0_3, %c0_4] : memref<1x256x3xf32, #tpu.memory_space<vmem>>, vector<1x256x3xf32>
    %3 = vector.shape_cast %2 : vector<1x256x3xf32> to vector<256x3xf32>
    %4 = vector.extract_strided_slice %3 {offsets = [0, 0], sizes = [256, 1], strides = [1, 1]} : vector<256x3xf32> to vector<256x1xf32>
    %5 = vector.extract_strided_slice %1 {offsets = [0, 0], sizes = [1, 64], strides = [1, 1]} : vector<3x64xf32> to vector<1x64xf32>
    %6 = vector.broadcast %4 : vector<256x1xf32> to vector<256x64xf32>
    %7 = vector.broadcast %5 : vector<1x64xf32> to vector<256x64xf32>
    %8 = arith.mulf %6, %7 : vector<256x64xf32>
    %9 = vector.extract_strided_slice %3 {offsets = [0, 1], sizes = [256, 1], strides = [1, 1]} : vector<256x3xf32> to vector<256x1xf32>
    %10 = vector.extract_strided_slice %1 {offsets = [1, 0], sizes = [1, 64], strides = [1, 1]} : vector<3x64xf32> to vector<1x64xf32>
    %11 = vector.broadcast %9 : vector<256x1xf32> to vector<256x64xf32>
    %12 = vector.broadcast %10 : vector<1x64xf32> to vector<256x64xf32>
    %13 = arith.mulf %11, %12 : vector<256x64xf32>
    %14 = arith.addf %8, %13 : vector<256x64xf32>
    %15 = vector.extract_strided_slice %3 {offsets = [0, 2], sizes = [256, 1], strides = [1, 1]} : vector<256x3xf32> to vector<256x1xf32>
    %16 = vector.extract_strided_slice %1 {offsets = [2, 0], sizes = [1, 64], strides = [1, 1]} : vector<3x64xf32> to vector<1x64xf32>
    %17 = vector.broadcast %15 : vector<256x1xf32> to vector<256x64xf32>
    %18 = vector.broadcast %16 : vector<1x64xf32> to vector<256x64xf32>
    %19 = arith.mulf %17, %18 : vector<256x64xf32>
    %20 = arith.addf %14, %19 : vector<256x64xf32>
    %c0_5 = arith.constant 0 : index
    %c0_6 = arith.constant 0 : index
    %c0_7 = arith.constant 0 : index
    %21 = vector.load %arg4[%c0_5, %c0_6, %c0_7] : memref<1x256x1xf32, #tpu.memory_space<vmem>>, vector<1x256x1xf32>
    %22 = vector.shape_cast %21 : vector<1x256x1xf32> to vector<256x1xf32>
    %23 = vector.broadcast %22 : vector<256x1xf32> to vector<256x64xf32>
    %24 = arith.addf %20, %23 : vector<256x64xf32>
    %cst = arith.constant 0.000000e+00 : f32
    %25 = vector.broadcast %cst : f32 to vector<256x64xf32>
    %26 = arith.maximumf %24, %25 : vector<256x64xf32>
    %27 = arith.truncf %26 : vector<256x64xf32> to vector<256x64xbf16>
    %c0_8 = arith.constant 0 : index
    %c0_9 = arith.constant 0 : index
    %28 = vector.load %arg5[%c0_8, %c0_9] : memref<256x256xbf16, #tpu.memory_space<vmem>>, vector<256x256xbf16>
    %cst_10 = arith.constant dense<0.000000e+00> : vector<256x64xf32>
    %29 = tpu.matmul %28, %27, %cst_10 {dimension_numbers = #tpu.dot_dimension_numbers<[1], [0], [0], [1], [0, 0, 1, 1], [], []>} : vector<256x256xbf16>, vector<256x64xbf16>, vector<256x64xf32> -> vector<256x64xf32>
    %c0_11 = arith.constant 0 : index
    %c0_12 = arith.constant 0 : index
    %30 = vector.load %arg6[%c0_11, %c0_12] : memref<256x1xf32, #tpu.memory_space<vmem>>, vector<256x1xf32>
    %31 = vector.broadcast %30 : vector<256x1xf32> to vector<256x64xf32>
    %32 = arith.addf %29, %31 : vector<256x64xf32>
    %cst_13 = arith.constant 0.000000e+00 : f32
    %33 = vector.broadcast %cst_13 : f32 to vector<256x64xf32>
    %34 = arith.maximumf %32, %33 : vector<256x64xf32>
    %c0_14 = arith.constant 0 : index
    %c0_15 = arith.constant 0 : index
    %35 = vector.load %arg7[%c0_14, %c0_15] : memref<256x1xf32, #tpu.memory_space<vmem>>, vector<256x1xf32>
    %36 = vector.broadcast %35 : vector<256x1xf32> to vector<256x64xf32>
    %37 = arith.mulf %34, %36 : vector<256x64xf32>
    %cst_16 = arith.constant dense<0.000000e+00> : vector<64xf32>
    %38 = vector.multi_reduction <add>, %37, %cst_16 [0] : vector<256x64xf32> to vector<64xf32>
    %39 = vector.shape_cast %38 : vector<64xf32> to vector<1x64xf32>
    %c0_17 = arith.constant 0 : index
    %c0_18 = arith.constant 0 : index
    %40 = vector.load %arg8[%c0_17, %c0_18] : memref<1x1xf32, #tpu.memory_space<vmem>>, vector<1x1xf32>
    %41 = vector.broadcast %40 : vector<1x1xf32> to vector<1x64xf32>
    %42 = arith.addf %39, %41 : vector<1x64xf32>
    %c0_19 = arith.constant 0 : index
    %c0_20 = arith.constant 0 : index
    %c0_21 = arith.constant 0 : index
    %43 = vector.load %arg9[%c0_19, %c0_20, %c0_21] : memref<1x1x64xf32, #tpu.memory_space<vmem>>, vector<1x1x64xf32>
    %44 = vector.shape_cast %43 : vector<1x1x64xf32> to vector<1x64xf32>
    %45 = vector.shape_cast %42 : vector<1x64xf32> to vector<1x1x64xf32>
    tpu.vector_store %arg9[%c0_19, %c0_20, %c0_21], %45 {strides = array<i32>} : memref<1x1x64xf32, #tpu.memory_space<vmem>>, vector<1x1x64xf32>,
    return
  }
  func.func @transform_0(%arg0: i32, %arg1: i32) -> (i32, i32, i32) {
    %c0_i32 = arith.constant 0 : i32
    %c0_i32_0 = arith.constant 0 : i32
    return %arg0, %c0_i32, %arg1 : i32, i32, i32
  }
  func.func @transform_1(%arg0: i32, %arg1: i32) -> (i32, i32, i32) {
    %c0_i32 = arith.constant 0 : i32
    %c0_i32_0 = arith.constant 0 : i32
    %c0_i32_1 = arith.constant 0 : i32
    return %arg0, %c0_i32, %c0_i32_0 : i32, i32, i32
  }
  func.func @transform_2(%arg0: i32, %arg1: i32) -> (i32, i32, i32) {
    %c0_i32 = arith.constant 0 : i32
    %c0_i32_0 = arith.constant 0 : i32
    %c0_i32_1 = arith.constant 0 : i32
    return %arg0, %c0_i32, %c0_i32_0 : i32, i32, i32
  }
  func.func @transform_3(%arg0: i32, %arg1: i32) -> (i32, i32) {
    %c0_i32 = arith.constant 0 : i32
    %c0_i32_0 = arith.constant 0 : i32
    %c0_i32_1 = arith.constant 0 : i32
    return %c0_i32, %c0_i32_0 : i32, i32
  }
  func.func @transform_4(%arg0: i32, %arg1: i32) -> (i32, i32) {
    %c0_i32 = arith.constant 0 : i32
    %c0_i32_0 = arith.constant 0 : i32
    %c0_i32_1 = arith.constant 0 : i32
    return %c0_i32, %c0_i32_0 : i32, i32
  }
  func.func @transform_5(%arg0: i32, %arg1: i32) -> (i32, i32) {
    %c0_i32 = arith.constant 0 : i32
    %c0_i32_0 = arith.constant 0 : i32
    %c0_i32_1 = arith.constant 0 : i32
    return %c0_i32, %c0_i32_0 : i32, i32
  }
  func.func @transform_6(%arg0: i32, %arg1: i32) -> (i32, i32) {
    %c0_i32 = arith.constant 0 : i32
    %c0_i32_0 = arith.constant 0 : i32
    %c0_i32_1 = arith.constant 0 : i32
    return %c0_i32, %c0_i32_0 : i32, i32
  }
  func.func @transform_7(%arg0: i32, %arg1: i32) -> (i32, i32, i32) {
    %c0_i32 = arith.constant 0 : i32
    %c0_i32_0 = arith.constant 0 : i32
    return %arg0, %c0_i32, %arg1 : i32, i32, i32
  }
}

</mosaic_0001>

<llo_original>
// kernel: pointnet2_wpos_forward.3
$region0: #{pointnet2_wpos_forward.3}
  #allocation0 [shape = 'u32[]', space=smem, size = 0x4, offset = 0x4, fixed_abs, tag = 'smem constant byte address 0x4 - core index']
  #allocation1 [shape = 'u32[144,128]{1,0:T(1,128)}', space=vmem, size = 0x12000, scoped, tag = 'internal scratch']
  %s0 = inlined_call_operand.vmem [shape: f32[2,64,3], index: 0, kind: input, shape index: {}]
  %s1 = inlined_call_operand.vmem [shape: f32[2,3,64], index: 1, kind: input, shape index: {}]
  %s2 = inlined_call_operand.vmem [shape: f32[1,64], index: 2, kind: input, shape index: {}]
  %s3 = inlined_call_operand.vmem [shape: bf16[64,128], index: 3, kind: input, shape index: {}]
  %s4 = inlined_call_operand.vmem [shape: f32[1,128], index: 4, kind: input, shape index: {}]
  %s5 = inlined_call_operand.vmem [shape: bf16[128,256], index: 5, kind: input, shape index: {}]
  %s6 = inlined_call_operand.vmem [shape: f32[1,256], index: 6, kind: input, shape index: {}]
  %s7 = inlined_call_operand.vmem [shape: f32[2,8,256], index: 7, kind: output, shape index: {}]
  %s8 = sld [smem:[#allocation0]]
  $region61: #{pointnet2_wpos_forward.3} parent=0
    _
  %s10 = ssub.s32 1, %s8
  %s11 = scalar_select 0, %s10, %s8
  loop: start=0, step=1, limit=4
  $region2: #{pointnet2_wpos_forward.3} parent=0 // loop_pre_header
    _
  $region3: #{pointnet2_wpos_forward.3} parent=0 // loop_header
    %s13 = sphi 0, %s17
    %p14 = scmp.ge.s32.totalorder %s13, 4
    %s20 = sphi 0, %s32
    %s21 = sphi 0, %s28
    %s22 = sphi 0, %s20
    %s23 = sphi 0, %s21
    %s24 = sphi 0, %s22
    %s25 = sphi 0, %s23
    %s37 = sphi 0, %s39
    %s40 = sphi 0, %s37
    %s41 = sphi 0, %s40
    %s57 = sphi 0, %s41
    %s63 = sphi 0, %s65
    %s66 = sphi 0, %s63
    %s67 = sphi 0, %s66
    %s83 = sphi 0, %s67
    %s87 = sphi 0, %s87
    %s89 = sphi 0, %s87
    %s90 = sphi 0, %s89
    %s104 = sphi 0, %s90
    %s108 = sphi 0, %s108
    %s110 = sphi 0, %s108
    %s111 = sphi 0, %s110
    %s125 = sphi 0, %s111
    %s129 = sphi 0, %s129
    %s131 = sphi 0, %s129
    %s132 = sphi 0, %s131
    %s146 = sphi 0, %s132
    %s150 = sphi 0, %s150
    %s152 = sphi 0, %s150
    %s153 = sphi 0, %s152
    %s167 = sphi 0, %s153
    %s171 = sphi 0, %s171
    %s173 = sphi 0, %s171
    %s174 = sphi 0, %s173
    %s188 = sphi 0, %s174
    %s196 = sphi 0, %s198
    %s199 = sphi 0, %s196
    %s200 = sphi 0, %s199
    %s216 = sphi 0, %s200
  $region4: #{pointnet2_wpos_forward.3} parent=0 // loop_header_branch
    %16 = sbr.rel (%p14) target = $region8
  $region5: #{pointnet2_wpos_forward.3} parent=0 // loop_body
    %s18 = ssub.s32 %s13, 1
    %s19 = ssub.s32 %s13, 2
    %s26 = sadd.s32 1, %s21
    %p27 = scmp.ge.s32.totalorder %s26, 1
    %s28 = scalar_select %p27, 0, %s26
    %s29 = sadd.s32 1, %s20
    %s30 = scalar_select %p27, %s29, %s20
    %p31 = scmp.ge.s32.totalorder %s30, 2
    %s32 = scalar_select %p31, 0, %s30
    %s33 = ssub.s32 %s20, %s32
    %s34 = ssub.s32 %s21, %s28
    %s35 = sor.u32 %s33, %s34
    %p36 = scmp.eq.s32.totalorder %s35, 0
    %s38 = sadd.s32 %s37, 1
    %s39 = scalar_select %p36, %s37, %s38
    %p42 = pneg %p36
    %p43 = scmp.eq.s32.totalorder %s13, 1
    %p44 = por %p42, %p43
    %p45 = scmp.ne.s32.totalorder %s37, %s40
    %p46 = scmp.eq.s32.totalorder %s13, 0
    %p47 = por %p45, %p46
    %p48 = scmp.ne.s32.totalorder %s37, %s40
    %p49 = scmp.eq.s32.totalorder %s18, 1
    %p50 = por %p48, %p49
    %p51 = scmp.ne.s32.totalorder %s40, %s41
    %p52 = scmp.eq.s32.totalorder %s18, 0
    %p53 = por %p51, %p52
    %p54 = scmp.ne.s32.totalorder %s40, %s41
    %p55 = scmp.eq.s32.totalorder %s19, 1
    %p56 = por %p54, %p55
    %p58 = scmp.ne.s32.totalorder %s41, %s57
    %p59 = scmp.eq.s32.totalorder %s19, 0
    %p60 = por %p58, %p59
    %s61 = ssub.s32 %s20, %s32
    %p62 = scmp.eq.s32.totalorder %s61, 0
    %s64 = sadd.s32 %s63, 1
    %s65 = scalar_select %p62, %s63, %s64
    %p68 = pneg %p62
    %p69 = scmp.eq.s32.totalorder %s13, 1
    %p70 = por %p68, %p69
    %p71 = scmp.ne.s32.totalorder %s63, %s66
    %p72 = scmp.eq.s32.totalorder %s13, 0
    %p73 = por %p71, %p72
    %p74 = scmp.ne.s32.totalorder %s63, %s66
    %p75 = scmp.eq.s32.totalorder %s18, 1
    %p76 = por %p74, %p75
    %p77 = scmp.ne.s32.totalorder %s66, %s67
    %p78 = scmp.eq.s32.totalorder %s18, 0
    %p79 = por %p77, %p78
    %p80 = scmp.ne.s32.totalorder %s66, %s67
    %p81 = scmp.eq.s32.totalorder %s19, 1
    %p82 = por %p80, %p81
    %p84 = scmp.ne.s32.totalorder %s67, %s83
    %p85 = scmp.eq.s32.totalorder %s19, 0
    %p86 = por %p84, %p85
    %s88 = sadd.s32 %s87, 1
    %p91 = scmp.eq.s32.totalorder %s13, 1
    %p92 = scmp.ne.s32.totalorder %s87, %s89
    %p93 = scmp.eq.s32.totalorder %s13, 0
    %p94 = por %p92, %p93
    %p95 = scmp.ne.s32.totalorder %s87, %s89
    %p96 = scmp.eq.s32.totalorder %s18, 1
    %p97 = por %p95, %p96
    %p98 = scmp.ne.s32.totalorder %s89, %s90
    %p99 = scmp.eq.s32.totalorder %s18, 0
    %p100 = por %p98, %p99
    %p101 = scmp.ne.s32.totalorder %s89, %s90
    %p102 = scmp.eq.s32.totalorder %s19, 1
    %p103 = por %p101, %p102
    %p105 = scmp.ne.s32.totalorder %s90, %s104
    %p106 = scmp.eq.s32.totalorder %s19, 0
    %p107 = por %p105, %p106
    %s109 = sadd.s32 %s108, 1
    %p112 = scmp.eq.s32.totalorder %s13, 1
    %p113 = scmp.ne.s32.totalorder %s108, %s110
    %p114 = scmp.eq.s32.totalorder %s13, 0
    %p115 = por %p113, %p114
    %p116 = scmp.ne.s32.totalorder %s108, %s110
    %p117 = scmp.eq.s32.totalorder %s18, 1
    %p118 = por %p116, %p117
    %p119 = scmp.ne.s32.totalorder %s110, %s111
    %p120 = scmp.eq.s32.totalorder %s18, 0
    %p121 = por %p119, %p120
    %p122 = scmp.ne.s32.totalorder %s110, %s111
    %p123 = scmp.eq.s32.totalorder %s19, 1
    %p124 = por %p122, %p123
    %p126 = scmp.ne.s32.totalorder %s111, %s125
    %p127 = scmp.eq.s32.totalorder %s19, 0
    %p128 = por %p126, %p127
    %s130 = sadd.s32 %s129, 1
    %p133 = scmp.eq.s32.totalorder %s13, 1
    %p134 = scmp.ne.s32.totalorder %s129, %s131
    %p135 = scmp.eq.s32.totalorder %s13, 0
    %p136 = por %p134, %p135
    %p137 = scmp.ne.s32.totalorder %s129, %s131
    %p138 = scmp.eq.s32.totalorder %s18, 1
    %p139 = por %p137, %p138
    %p140 = scmp.ne.s32.totalorder %s131, %s132
    %p141 = scmp.eq.s32.totalorder %s18, 0
    %p142 = por %p140, %p141
    %p143 = scmp.ne.s32.totalorder %s131, %s132
    %p144 = scmp.eq.s32.totalorder %s19, 1
    %p145 = por %p143, %p144
    %p147 = scmp.ne.s32.totalorder %s132, %s146
    %p148 = scmp.eq.s32.totalorder %s19, 0
    %p149 = por %p147, %p148
    %s151 = sadd.s32 %s150, 1
    %p154 = scmp.eq.s32.totalorder %s13, 1
    %p155 = scmp.ne.s32.totalorder %s150, %s152
    %p156 = scmp.eq.s32.totalorder %s13, 0
    %p157 = por %p155, %p156
    %p158 = scmp.ne.s32.totalorder %s150, %s152
    %p159 = scmp.eq.s32.totalorder %s18, 1
    %p160 = por %p158, %p159
    %p161 = scmp.ne.s32.totalorder %s152, %s153
    %p162 = scmp.eq.s32.totalorder %s18, 0
    %p163 = por %p161, %p162
    %p164 = scmp.ne.s32.totalorder %s152, %s153
    %p165 = scmp.eq.s32.totalorder %s19, 1
    %p166 = por %p164, %p165
    %p168 = scmp.ne.s32.totalorder %s153, %s167
    %p169 = scmp.eq.s32.totalorder %s19, 0
    %p170 = por %p168, %p169
    %s172 = sadd.s32 %s171, 1
    %p175 = scmp.eq.s32.totalorder %s13, 1
    %p176 = scmp.ne.s32.totalorder %s171, %s173
    %p177 = scmp.eq.s32.totalorder %s13, 0
    %p178 = por %p176, %p177
    %p179 = scmp.ne.s32.totalorder %s171, %s173
    %p180 = scmp.eq.s32.totalorder %s18, 1
    %p181 = por %p179, %p180
    %p182 = scmp.ne.s32.totalorder %s173, %s174
    %p183 = scmp.eq.s32.totalorder %s18, 0
    %p184 = por %p182, %p183
    %p185 = scmp.ne.s32.totalorder %s173, %s174
    %p186 = scmp.eq.s32.totalorder %s19, 1
    %p187 = por %p185, %p186
    %p189 = scmp.ne.s32.totalorder %s174, %s188
    %p190 = scmp.eq.s32.totalorder %s19, 0
    %p191 = por %p189, %p190
    %s192 = ssub.s32 %s20, %s32
    %s193 = ssub.s32 %s21, %s28
    %s194 = sor.u32 %s192, %s193
    %p195 = scmp.eq.s32.totalorder %s194, 0
    %s197 = sadd.s32 %s196, 1
    %s198 = scalar_select %p195, %s196, %s197
    %p201 = pneg %p195
    %p202 = scmp.eq.s32.totalorder %s13, 1
    %p203 = por %p201, %p202
    %p204 = scmp.ne.s32.totalorder %s196, %s199
    %p205 = scmp.eq.s32.totalorder %s13, 0
    %p206 = por %p204, %p205
    %p207 = scmp.ne.s32.totalorder %s196, %s199
    %p208 = scmp.eq.s32.totalorder %s18, 1
    %p209 = por %p207, %p208
    %p210 = scmp.ne.s32.totalorder %s199, %s200
    %p211 = scmp.eq.s32.totalorder %s18, 0
    %p212 = por %p210, %p211
    %p213 = scmp.ne.s32.totalorder %s199, %s200
    %p214 = scmp.eq.s32.totalorder %s19, 1
    %p215 = por %p213, %p214
    %p217 = scmp.ne.s32.totalorder %s200, %s216
    %p218 = scmp.eq.s32.totalorder %s19, 0
    %p219 = por %p217, %p218
    %p220 = scmp.le.s32.totalorder 1, %s13
    %p221 = scmp.lt.s32.totalorder %s13, 3
    %p222 = pnand %p220, %p221
    %p223 = pneg %p222
    // Predicated region
    $region9: #{pointnet2_wpos_forward.3} parent=5 // pred_check
      _
    $region10: #{pointnet2_wpos_forward.3} parent=5 // pred_check_branch
      %225 = sbr.rel (%p222) target = $region12
    $region11: #{pointnet2_wpos_forward.3} parent=5 // pred_region
      %s226 = ssub.s32 %s13, 1
      // Predicated region
      $region13: #{pointnet2_wpos_forward.3} parent=11 // pred_check
        %p227 = pneg %p100
      $region14: #{pointnet2_wpos_forward.3} parent=11 // pred_check_branch
        %229 = sbr.rel (%p227) target = $region16
      $region15: #{pointnet2_wpos_forward.3} parent=11 // pred_region
        _
      $region16: #{pointnet2_wpos_forward.3} parent=11 // pred_fallthru
        _
      // Predicated region
      $region17: #{pointnet2_wpos_forward.3} parent=11 // pred_check
        %p230 = pneg %p121
      $region18: #{pointnet2_wpos_forward.3} parent=11 // pred_check_branch
        %232 = sbr.rel (%p230) target = $region20
      $region19: #{pointnet2_wpos_forward.3} parent=11 // pred_region
        _
      $region20: #{pointnet2_wpos_forward.3} parent=11 // pred_fallthru
        _
      // Predicated region
      $region21: #{pointnet2_wpos_forward.3} parent=11 // pred_check
        %p233 = pneg %p142
      $region22: #{pointnet2_wpos_forward.3} parent=11 // pred_check_branch
        %235 = sbr.rel (%p233) target = $region24
      $region23: #{pointnet2_wpos_forward.3} parent=11 // pred_region
        _
      $region24: #{pointnet2_wpos_forward.3} parent=11 // pred_fallthru
        _
      // Predicated region
      $region25: #{pointnet2_wpos_forward.3} parent=11 // pred_check
        %p236 = pneg %p163
      $region26: #{pointnet2_wpos_forward.3} parent=11 // pred_check_branch
        %238 = sbr.rel (%p236) target = $region28
      $region27: #{pointnet2_wpos_forward.3} parent=11 // pred_region
        _
      $region28: #{pointnet2_wpos_forward.3} parent=11 // pred_fallthru
        _
      // Predicated region
      $region29: #{pointnet2_wpos_forward.3} parent=11 // pred_check
        %p239 = pneg %p184
      $region30: #{pointnet2_wpos_forward.3} parent=11 // pred_check_branch
        %241 = sbr.rel (%p239) target = $region32
      $region31: #{pointnet2_wpos_forward.3} parent=11 // pred_region
        _
      $region32: #{pointnet2_wpos_forward.3} parent=11 // pred_fallthru
        _
    $region12: #{pointnet2_wpos_forward.3} parent=5 // pred_fallthru
      _
    %p242 = scmp.lt.s32.totalorder %s13, 2
    // Predicated region
    $region33: #{pointnet2_wpos_forward.3} parent=5 // pred_check
      %p243 = pneg %p242
    $region34: #{pointnet2_wpos_forward.3} parent=5 // pred_check_branch
      %245 = sbr.rel (%p243) target = $region36
    $region35: #{pointnet2_wpos_forward.3} parent=5 // pred_region
      // Predicated region
      $region37: #{pointnet2_wpos_forward.3} parent=35 // pred_check
        %p246 = pneg %p47
      $region38: #{pointnet2_wpos_forward.3} parent=35 // pred_check_branch
        %248 = sbr.rel (%p246) target = $region40
      $region39: #{pointnet2_wpos_forward.3} parent=35 // pred_region
        %s249 = smul.u32 8, %s21
        %p250 = scmp.lt.s32.totalorder %s20, 1
        %s251 = scalar_select %p250, %s20, 1
        %p252 = scmp.lt.s32.totalorder %s249, 7
        %s253 = scalar_select %p252, %s249, 7
        %s254 = smul.addr %s251, 8
        %s255 = sadd.s32 %s253, %s254
        %s256 = smul.addr %s255, 8
        %s257 = scalar_lea.vmem %s0, %s256
        %s258 = smul.u32 8, %s21
      $region40: #{pointnet2_wpos_forward.3} parent=35 // pred_fallthru
        _
      // Predicated region
      $region41: #{pointnet2_wpos_forward.3} parent=35 // pred_check
        %p259 = pneg %p73
      $region42: #{pointnet2_wpos_forward.3} parent=35 // pred_check_branch
        %261 = sbr.rel (%p259) target = $region44
      $region43: #{pointnet2_wpos_forward.3} parent=35 // pred_region
        %p262 = scmp.lt.s32.totalorder %s20, 1
        %s263 = scalar_select %p262, %s20, 1
        %s264 = smul.addr %s263, 4
        %s265 = scalar_lea.vmem %s1, %s264
      $region44: #{pointnet2_wpos_forward.3} parent=35 // pred_fallthru
        _
    $region36: #{pointnet2_wpos_forward.3} parent=5 // pred_fallthru
      _
    %p266 = scmp.le.s32.totalorder 1, %s13
    %p267 = scmp.lt.s32.totalorder %s13, 3
    %p268 = pnand %p266, %p267
    %p269 = pneg %p268
    // Predicated region
    $region45: #{pointnet2_wpos_forward.3} parent=5 // pred_check
      _
    $region46: #{pointnet2_wpos_forward.3} parent=5 // pred_check_branch
      %271 = sbr.rel (%p268) target = $region48
    $region47: #{pointnet2_wpos_forward.3} parent=5 // pred_region
      %s272 = ssub.s32 %s13, 1
      %s273 = smul.u32 8, %s23
      %p274 = scmp.lt.s32.totalorder %s22, 1
      %s275 = scalar_select %p274, %s22, 1
      %p276 = scmp.lt.s32.totalorder %s273, 7
      %s277 = scalar_select %p276, %s273, 7
      %s278 = smul.addr %s275, 8
      %s279 = sadd.s32 %s277, %s278
      %s280 = smul.addr %s279, 8
      %s281 = scalar_lea.vmem %s0, %s280
      %p282 = pneg %p53
      %p283 = pneg %p50
      %p284 = scmp.lt.s32.totalorder %s22, 1
      %s285 = scalar_select %p284, %s22, 1
      %s286 = smul.addr %s285, 4
      %s287 = scalar_lea.vmem %s1, %s286
      %p288 = pneg %p79
      %p289 = pneg %p76
      %p290 = pneg %p100
      %p291 = pneg %p97
      %p292 = pneg %p121
      %p293 = pneg %p118
      %p294 = pneg %p142
      %p295 = pneg %p139
      %p296 = pneg %p163
      %p297 = pneg %p160
      %p298 = pneg %p184
      %p299 = pneg %p181
      %p300 = pneg %p212
      %p301 = pneg %p209
      %p302 = scmp.lt.s32.totalorder %s22, 1
      %s303 = scalar_select %p302, %s22, 1
      %p304 = scmp.lt.s32.totalorder %s23, 0
      %s305 = scalar_select %p304, %s23, 0
      %s306 = smul.addr %s305, 2
      %s307 = smul.addr %s303, 2
      %s308 = sadd.s32 %s306, %s307
      %s309 = smul.addr %s308, 8
      %s310 = scalar_lea.vmem %s7, %s309
      %s311 = smul.u32 8, %s23
      %p312 = scmp.lt.s32.totalorder %s22, 1
      %s313 = scalar_select %p312, %s22, 1
      %p314 = scmp.lt.s32.totalorder %s311, 7
      %s315 = scalar_select %p314, %s311, 7
      %s316 = smul.addr %s313, 8
      %s317 = sadd.s32 %s315, %s316
      %s318 = smul.addr %s317, 8
      %s319 = scalar_lea.vmem %s0, %s318
      %s320 = smul.u32 8, %s23
      %p321 = scmp.lt.s32.totalorder %s22, 1
      %s322 = scalar_select %p321, %s22, 1
      %s323 = smul.addr %s322, 4
      %s324 = scalar_lea.vmem %s1, %s323
      %p325 = scmp.lt.s32.totalorder %s22, 1
      %s326 = scalar_select %p325, %s22, 1
      %p327 = scmp.lt.s32.totalorder %s23, 0
      %s328 = scalar_select %p327, %s23, 0
      %s329 = smul.addr %s328, 2
      %s330 = smul.addr %s326, 2
      %s331 = sadd.s32 %s329, %s330
      %s332 = smul.addr %s331, 8
      %s333 = scalar_lea.vmem %s7, %s332
      %v335 = vld [vmem:[%s319] sm:$0xff]
      %v336 = vld [vmem:[%s319 + $0x8] sm:$0xff]
      %v337 = vld [vmem:[%s319 + $0x10] sm:$0xff]
      %v338 = vld [vmem:[%s319 + $0x18] sm:$0xff]
      %v339 = vld [vmem:[%s319 + $0x20] sm:$0xff]
      %v340 = vld [vmem:[%s319 + $0x28] sm:$0xff]
      %v341 = vld [vmem:[%s319 + $0x30] sm:$0xff]
      %v342 = vld [vmem:[%s319 + $0x38] sm:$0xff]
      %v343 = vld [vmem:[%s324] sm:$0x7]
      %345 = vset.pattern.permute.xlu0 0
      %346 = vperm.xlu0 %345, %v335
      %v347 = vpop.permute.xlu0 %346
      %350 = vset.pattern.permute.xlu0 0
      %351 = vperm.xlu0 %350, %v336
      %v352 = vpop.permute.xlu0 %351
      %355 = vset.pattern.permute.xlu0 0
      %356 = vperm.xlu0 %355, %v337
      %v357 = vpop.permute.xlu0 %356
      %360 = vset.pattern.permute.xlu0 0
      %361 = vperm.xlu0 %360, %v338
      %v362 = vpop.permute.xlu0 %361
      %365 = vset.pattern.permute.xlu0 0
      %366 = vperm.xlu0 %365, %v339
      %v367 = vpop.permute.xlu0 %366
      %370 = vset.pattern.permute.xlu0 0
      %371 = vperm.xlu0 %370, %v340
      %v372 = vpop.permute.xlu0 %371
      %375 = vset.pattern.permute.xlu0 0
      %376 = vperm.xlu0 %375, %v341
      %v377 = vpop.permute.xlu0 %376
      %380 = vset.pattern.permute.xlu0 0
      %381 = vperm.xlu0 %380, %v342
      %v382 = vpop.permute.xlu0 %381
      %v384 = vlaneseq
      %v385 = vshrl.u32 %v384, 7
      %v386 = vsub.s32 0, %v385
      %v387 = vrot.slane %v343, %v386
      %v388 = vmul.f32 %v347, %v387
      %v389 = vmul.f32 %v352, %v387
      %v390 = vmul.f32 %v357, %v387
      %v391 = vmul.f32 %v362, %v387
      %v392 = vmul.f32 %v367, %v387
      %v393 = vmul.f32 %v372, %v387
      %v394 = vmul.f32 %v377, %v387
      %v395 = vmul.f32 %v382, %v387
      %396 = vset.pattern.permute.xlu0 1
      %397 = vperm.xlu0 %396, %v335
      %v398 = vpop.permute.xlu0 %397
      %400 = vset.pattern.permute.xlu0 1
      %401 = vperm.xlu0 %400, %v336
      %v402 = vpop.permute.xlu0 %401
      %404 = vset.pattern.permute.xlu0 1
      %405 = vperm.xlu0 %404, %v337
      %v406 = vpop.permute.xlu0 %405
      %408 = vset.pattern.permute.xlu0 1
      %409 = vperm.xlu0 %408, %v338
      %v410 = vpop.permute.xlu0 %409
      %412 = vset.pattern.permute.xlu0 1
      %413 = vperm.xlu0 %412, %v339
      %v414 = vpop.permute.xlu0 %413
      %416 = vset.pattern.permute.xlu0 1
      %417 = vperm.xlu0 %416, %v340
      %v418 = vpop.permute.xlu0 %417
      %420 = vset.pattern.permute.xlu0 1
      %421 = vperm.xlu0 %420, %v341
      %v422 = vpop.permute.xlu0 %421
      %424 = vset.pattern.permute.xlu0 1
      %425 = vperm.xlu0 %424, %v342
      %v426 = vpop.permute.xlu0 %425
      %v428 = vlaneseq
      %v429 = vshrl.u32 %v428, 7
      %v430 = vsub.s32 1, %v429
      %v431 = vrot.slane %v343, %v430
      %v432 = vmul.f32 %v398, %v431
      %v433 = vmul.f32 %v402, %v431
      %v434 = vmul.f32 %v406, %v431
      %v435 = vmul.f32 %v410, %v431
      %v436 = vmul.f32 %v414, %v431
      %v437 = vmul.f32 %v418, %v431
      %v438 = vmul.f32 %v422, %v431
      %v439 = vmul.f32 %v426, %v431
      %v440 = vadd.f32 %v388, %v432
      %v441 = vadd.f32 %v389, %v433
      %v442 = vadd.f32 %v390, %v434
      %v443 = vadd.f32 %v391, %v435
      %v444 = vadd.f32 %v392, %v436
      %v445 = vadd.f32 %v393, %v437
      %v446 = vadd.f32 %v394, %v438
      %v447 = vadd.f32 %v395, %v439
      %448 = vset.pattern.permute.xlu0 2
      %449 = vperm.xlu0 %448, %v335
      %v450 = vpop.permute.xlu0 %449
      %452 = vset.pattern.permute.xlu0 2
      %453 = vperm.xlu0 %452, %v336
      %v454 = vpop.permute.xlu0 %453
      %456 = vset.pattern.permute.xlu0 2
      %457 = vperm.xlu0 %456, %v337
      %v458 = vpop.permute.xlu0 %457
      %460 = vset.pattern.permute.xlu0 2
      %461 = vperm.xlu0 %460, %v338
      %v462 = vpop.permute.xlu0 %461
      %464 = vset.pattern.permute.xlu0 2
      %465 = vperm.xlu0 %464, %v339
      %v466 = vpop.permute.xlu0 %465
      %468 = vset.pattern.permute.xlu0 2
      %469 = vperm.xlu0 %468, %v340
      %v470 = vpop.permute.xlu0 %469
      %472 = vset.pattern.permute.xlu0 2
      %473 = vperm.xlu0 %472, %v341
      %v474 = vpop.permute.xlu0 %473
      %476 = vset.pattern.permute.xlu0 2
      %477 = vperm.xlu0 %476, %v342
      %v478 = vpop.permute.xlu0 %477
      %v480 = vlaneseq
      %v481 = vshrl.u32 %v480, 7
      %v482 = vsub.s32 2, %v481
      %v483 = vrot.slane %v343, %v482
      %v484 = vmul.f32 %v450, %v483
      %v485 = vmul.f32 %v454, %v483
      %v486 = vmul.f32 %v458, %v483
      %v487 = vmul.f32 %v462, %v483
      %v488 = vmul.f32 %v466, %v483
      %v489 = vmul.f32 %v470, %v483
      %v490 = vmul.f32 %v474, %v483
      %v491 = vmul.f32 %v478, %v483
      %v492 = vadd.f32 %v440, %v484
      %v493 = vadd.f32 %v441, %v485
      %v494 = vadd.f32 %v442, %v486
      %v495 = vadd.f32 %v443, %v487
      %v496 = vadd.f32 %v444, %v488
      %v497 = vadd.f32 %v445, %v489
      %v498 = vadd.f32 %v446, %v490
      %v499 = vadd.f32 %v447, %v491
      %v500 = vld [vmem:[%s2] sm:$0x1]
      %v502 = vlaneseq
      %v503 = vshrl.u32 %v502, 7
      %v504 = vsub.s32 0, %v503
      %v505 = vrot.slane %v500, %v504
      %v507 = vadd.f32 %v492, %v505
      %v508 = vadd.f32 %v493, %v505
      %v509 = vadd.f32 %v494, %v505
      %v510 = vadd.f32 %v495, %v505
      %v511 = vadd.f32 %v496, %v505
      %v512 = vadd.f32 %v497, %v505
      %v513 = vadd.f32 %v498, %v505
      %v514 = vadd.f32 %v499, %v505
      %v515 = vmax.f32 %v507, 0.0
      %v516 = vmax.f32 %v508, 0.0
      %v517 = vmax.f32 %v509, 0.0
      %v518 = vmax.f32 %v510, 0.0
      %v519 = vmax.f32 %v511, 0.0
      %v520 = vmax.f32 %v512, 0.0
      %v521 = vmax.f32 %v513, 0.0
      %v522 = vmax.f32 %v514, 0.0
      %v523 = vpack.c.bf16 %v516, %v515
      %v524 = vpack.c.bf16 %v518, %v517
      %v525 = vpack.c.bf16 %v520, %v519
      %v526 = vpack.c.bf16 %v522, %v521
      %v527 = vld [vmem:[%s3] sm:$0xf]
      %v528 = vld [vmem:[%s3 + $0x4] sm:$0xf]
      %v529 = vld [vmem:[%s3 + $0x8] sm:$0xf]
      %v530 = vld [vmem:[%s3 + $0xc] sm:$0xf]
      %v531 = vld [vmem:[%s3 + $0x10] sm:$0xf]
      %v532 = vld [vmem:[%s3 + $0x14] sm:$0xf]
      %v533 = vld [vmem:[%s3 + $0x18] sm:$0xf]
      %v534 = vld [vmem:[%s3 + $0x1c] sm:$0xf]
      %v535 = vld [vmem:[%s4] sm:$0x1]
      %v537 = vlaneseq
      %v538 = vshrl.u32 %v537, 7
      %v539 = vsub.s32 0, %v538
      %v540 = vrot.slane %v535, %v539
      %v550 = vunpack.c.l.b16 %v527
      %v551 = vunpack.c.l.b16 %v528
      %v552 = vunpack.c.l.b16 %v529
      %v553 = vunpack.c.l.b16 %v530
      %v554 = vunpack.c.l.b16 %v531
      %v555 = vunpack.c.l.b16 %v532
      %v556 = vunpack.c.l.b16 %v533
      %v557 = vunpack.c.l.b16 %v534
      %v558 = vpack.c.b16 %v551, %v550
      %v559 = vpack.c.b16 %v553, %v552
      %v560 = vpack.c.b16 %v555, %v554
      %v561 = vpack.c.b16 %v557, %v556
      %vm566 = vcmask 523264
      %v568 = vsel %vm566, %v523, 0
      %v571 = vsel %vm566, %v524, 0
      %v574 = vsel %vm566, %v525, 0
      %v577 = vsel %vm566, %v526, 0
      %579 = vmatprep.subr.bf16.mxu0 0
      %580 = vmatpush1.bf16.msra.mxu0 %v558
      %581 = vmatprep.subr.bf16.mxu0 0
      %582 = vmatpush1.bf16.msra.mxu0 %v559
      %583 = vmatprep.subr.bf16.mxu0 0
      %584 = vmatpush1.bf16.msra.mxu0 %v560
      %585 = vmatprep.subr.bf16.mxu0 0
      %586 = vmatpush1.bf16.msra.mxu0 %v561
      %587 = vmatprep.subr.bf16.mxu0 0
      %588 = vmatpush1.bf16.msra.mxu0 0
      %589 = vmatprep.subr.bf16.mxu0 0
      %590 = vmatpush1.bf16.msra.mxu0 0
      %591 = vmatprep.subr.bf16.mxu0 0
      %592 = vmatpush1.bf16.msra.mxu0 0
      %593 = vmatprep.subr.bf16.mxu0 0
      %594 = vmatpush1.bf16.msra.mxu0 0
      %595 = vmatprep.subr.bf16.mxu0 0
      %596 = vmatpush1.bf16.msra.mxu0 0
      %597 = vmatprep.subr.bf16.mxu0 0
      %598 = vmatpush1.bf16.msra.mxu0 0
      %599 = vmatprep.subr.bf16.mxu0 0
      %600 = vmatpush1.bf16.msra.mxu0 0
      %601 = vmatprep.subr.bf16.mxu0 0
      %602 = vmatpush1.bf16.msra.mxu0 0
      %603 = vmatprep.subr.bf16.mxu0 0
      %604 = vmatpush1.bf16.msra.mxu0 0
      %605 = vmatprep.subr.bf16.mxu0 0
      %606 = vmatpush1.bf16.msra.mxu0 0
      %607 = vmatprep.subr.bf16.mxu0 0
      %608 = vmatpush1.bf16.msra.mxu0 0
      %609 = vmatprep.subr.bf16.mxu0 0
      %610 = vmatpush1.bf16.msra.mxu0 0
      %611 = vmatprep.mubr.bf16.mxu0 0
      %612 = vmatmul.mubr.bf16.gmra.mrb[0].mxu0 %v568
      %v613 = vpop.f32.mrb[0].mxu0
      %v614 = vadd.f32 %v540, %v613
      %v615 = vpop.f32.mrb[0].mxu0
      %v616 = vpop.f32.mrb[0].mxu0
      %v617 = vadd.f32 %v540, %v616
      %v618 = vpop.f32.mrb[0].mxu0
      %619 = vmatprep.mubr.bf16.mxu0 0
      %620 = vmatmul.mubr.bf16.gmra.mrb[0].mxu0 %v571
      %v621 = vpop.f32.mrb[0].mxu0
      %v622 = vadd.f32 %v540, %v621
      %v623 = vpop.f32.mrb[0].mxu0
      %v624 = vpop.f32.mrb[0].mxu0
      %v625 = vadd.f32 %v540, %v624
      %v626 = vpop.f32.mrb[0].mxu0
      %627 = vmatprep.mubr.bf16.mxu0 0
      %628 = vmatmul.mubr.bf16.gmra.mrb[0].mxu0 %v574
      %v629 = vpop.f32.mrb[0].mxu0
      %v630 = vadd.f32 %v540, %v629
      %v631 = vpop.f32.mrb[0].mxu0
      %v632 = vpop.f32.mrb[0].mxu0
      %v633 = vadd.f32 %v540, %v632
      %v634 = vpop.f32.mrb[0].mxu0
      %635 = vmatprep.mubr.bf16.mxu0 0
      %636 = vmatmul.mubr.bf16.gmra.mrb[0].mxu0 %v577
      %v637 = vpop.f32.mrb[0].mxu0
      %v638 = vadd.f32 %v540, %v637
      %v639 = vpop.f32.mrb[0].mxu0
      %v640 = vpop.f32.mrb[0].mxu0
      %v641 = vadd.f32 %v540, %v640
      %v642 = vpop.f32.mrb[0].mxu0
      %643 = vdwg.mxu0
      %v644 = vmax.f32 %v614, 0.0
      %v645 = vmax.f32 %v617, 0.0
      %v646 = vmax.f32 %v622, 0.0
      %v647 = vmax.f32 %v625, 0.0
      %v648 = vmax.f32 %v630, 0.0
      %v649 = vmax.f32 %v633, 0.0
      %v650 = vmax.f32 %v638, 0.0
      %v651 = vmax.f32 %v641, 0.0
      %v652 = vpack.c.bf16 %v645, %v644
      %v653 = vpack.c.bf16 %v647, %v646
      %v654 = vpack.c.bf16 %v649, %v648
      %v655 = vpack.c.bf16 %v651, %v650
      %v656 = vld [vmem:[%s5] sm:$0xff]
      %v657 = vld [vmem:[%s5 + $0x8] sm:$0xff]
      %v658 = vld [vmem:[%s5 + $0x10] sm:$0xff]
      %v659 = vld [vmem:[%s5 + $0x18] sm:$0xff]
      %v660 = vld [vmem:[%s5 + $0x20] sm:$0xff]
      %v661 = vld [vmem:[%s5 + $0x28] sm:$0xff]
      %v662 = vld [vmem:[%s5 + $0x30] sm:$0xff]
      %v663 = vld [vmem:[%s5 + $0x38] sm:$0xff]
      %v664 = vld [vmem:[%s5 + $0x40] sm:$0xff]
      %v665 = vld [vmem:[%s5 + $0x48] sm:$0xff]
      %v666 = vld [vmem:[%s5 + $0x50] sm:$0xff]
      %v667 = vld [vmem:[%s5 + $0x58] sm:$0xff]
      %v668 = vld [vmem:[%s5 + $0x60] sm:$0xff]
      %v669 = vld [vmem:[%s5 + $0x68] sm:$0xff]
      %v670 = vld [vmem:[%s5 + $0x70] sm:$0xff]
      %v671 = vld [vmem:[%s5 + $0x78] sm:$0xff]
      %v672 = vld [vmem:[%s6] sm:$0x3]
      %v674 = vlaneseq
      %v675 = vshrl.u32 %v674, 7
      %v676 = vsub.s32 0, %v675
      %v677 = vrot.slane %v672, %v676
      %v678 = vlaneseq
      %v679 = vshrl.u32 %v678, 7
      %v680 = vsub.s32 1, %v679
      %v681 = vrot.slane %v672, %v680
      %v700 = vunpack.c.l.b16 %v656
      %v701 = vunpack.c.h.b16 %v656
      %v702 = vunpack.c.l.b16 %v657
      %v703 = vunpack.c.h.b16 %v657
      %v704 = vunpack.c.l.b16 %v658
      %v705 = vunpack.c.h.b16 %v658
      %v706 = vunpack.c.l.b16 %v659
      %v707 = vunpack.c.h.b16 %v659
      %v708 = vunpack.c.l.b16 %v660
      %v709 = vunpack.c.h.b16 %v660
      %v710 = vunpack.c.l.b16 %v661
      %v711 = vunpack.c.h.b16 %v661
      %v712 = vunpack.c.l.b16 %v662
      %v713 = vunpack.c.h.b16 %v662
      %v714 = vunpack.c.l.b16 %v663
      %v715 = vunpack.c.h.b16 %v663
      %v716 = vunpack.c.l.b16 %v664
      %v717 = vunpack.c.h.b16 %v664
      %v718 = vunpack.c.l.b16 %v665
      %v719 = vunpack.c.h.b16 %v665
      %v720 = vunpack.c.l.b16 %v666
      %v721 = vunpack.c.h.b16 %v666
      %v722 = vunpack.c.l.b16 %v667
      %v723 = vunpack.c.h.b16 %v667
      %v724 = vunpack.c.l.b16 %v668
      %v725 = vunpack.c.h.b16 %v668
      %v726 = vunpack.c.l.b16 %v669
      %v727 = vunpack.c.h.b16 %v669
      %v728 = vunpack.c.l.b16 %v670
      %v729 = vunpack.c.h.b16 %v670
      %v730 = vunpack.c.l.b16 %v671
      %v731 = vunpack.c.h.b16 %v671
      %v732 = vpack.c.b16 %v702, %v700
      %v733 = vpack.c.b16 %v703, %v701
      %v734 = vpack.c.b16 %v706, %v704
      %v735 = vpack.c.b16 %v707, %v705
      %v736 = vpack.c.b16 %v710, %v708
      %v737 = vpack.c.b16 %v711, %v709
      %v738 = vpack.c.b16 %v714, %v712
      %v739 = vpack.c.b16 %v715, %v713
      %v740 = vpack.c.b16 %v718, %v716
      %v741 = vpack.c.b16 %v719, %v717
      %v742 = vpack.c.b16 %v722, %v720
      %v743 = vpack.c.b16 %v723, %v721
      %v744 = vpack.c.b16 %v726, %v724
      %v745 = vpack.c.b16 %v727, %v725
      %v746 = vpack.c.b16 %v730, %v728
      %v747 = vpack.c.b16 %v731, %v729
      %764 = vmatprep.subr.bf16.mxu0 %v733
      %765 = vmatpush1.bf16.msra.mxu0 %v732
      %766 = vmatprep.subr.bf16.mxu0 %v735
      %767 = vmatpush1.bf16.msra.mxu0 %v734
      %768 = vmatprep.subr.bf16.mxu0 %v737
      %769 = vmatpush1.bf16.msra.mxu0 %v736
      %770 = vmatprep.subr.bf16.mxu0 %v739
      %771 = vmatpush1.bf16.msra.mxu0 %v738
      %772 = vmatprep.subr.bf16.mxu0 %v741
      %773 = vmatpush1.bf16.msra.mxu0 %v740
      %774 = vmatprep.subr.bf16.mxu0 %v743
      %775 = vmatpush1.bf16.msra.mxu0 %v742
      %776 = vmatprep.subr.bf16.mxu0 %v745
      %777 = vmatpush1.bf16.msra.mxu0 %v744
      %778 = vmatprep.subr.bf16.mxu0 %v747
      %779 = vmatpush1.bf16.msra.mxu0 %v746
      %780 = vmatprep.subr.bf16.mxu0 0
      %781 = vmatpush1.bf16.msra.mxu0 0
      %782 = vmatprep.subr.bf16.mxu0 0
      %783 = vmatpush1.bf16.msra.mxu0 0
      %784 = vmatprep.subr.bf16.mxu0 0
      %785 = vmatpush1.bf16.msra.mxu0 0
      %786 = vmatprep.subr.bf16.mxu0 0
      %787 = vmatpush1.bf16.msra.mxu0 0
      %788 = vmatprep.subr.bf16.mxu0 0
      %789 = vmatpush1.bf16.msra.mxu0 0
      %790 = vmatprep.subr.bf16.mxu0 0
      %791 = vmatpush1.bf16.msra.mxu0 0
      %792 = vmatprep.subr.bf16.mxu0 0
      %793 = vmatpush1.bf16.msra.mxu0 0
      %794 = vmatprep.subr.bf16.mxu0 0
      %795 = vmatpush1.bf16.msra.mxu0 0
      %796 = vmatprep.mubr.bf16.mxu0 0
      %797 = vmatmul.mubr.bf16.gmra.mrb[0].mxu0 %v652
      %v798 = vpop.f32.mrb[0].mxu0
      %v799 = vadd.f32 %v677, %v798
      %v800 = vpop.f32.mrb[0].mxu0
      %v801 = vadd.f32 %v681, %v800
      %v802 = vpop.f32.mrb[0].mxu0
      %v803 = vadd.f32 %v677, %v802
      %v804 = vpop.f32.mrb[0].mxu0
      %v805 = vadd.f32 %v681, %v804
      %806 = vmatprep.mubr.bf16.mxu0 0
      %807 = vmatmul.mubr.bf16.gmra.mrb[0].mxu0 %v653
      %v808 = vpop.f32.mrb[0].mxu0
      %v809 = vadd.f32 %v677, %v808
      %v810 = vpop.f32.mrb[0].mxu0
      %v811 = vadd.f32 %v681, %v810
      %v812 = vpop.f32.mrb[0].mxu0
      %v813 = vadd.f32 %v677, %v812
      %v814 = vpop.f32.mrb[0].mxu0
      %v815 = vadd.f32 %v681, %v814
      %816 = vmatprep.mubr.bf16.mxu0 0
      %817 = vmatmul.mubr.bf16.gmra.mrb[0].mxu0 %v654
      %v818 = vpop.f32.mrb[0].mxu0
      %v819 = vadd.f32 %v677, %v818
      %v820 = vpop.f32.mrb[0].mxu0
      %v821 = vadd.f32 %v681, %v820
      %v822 = vpop.f32.mrb[0].mxu0
      %v823 = vadd.f32 %v677, %v822
      %v824 = vpop.f32.mrb[0].mxu0
      %v825 = vadd.f32 %v681, %v824
      %826 = vmatprep.mubr.bf16.mxu0 0
      %827 = vmatmul.mubr.bf16.gmra.mrb[0].mxu0 %v655
      %v828 = vpop.f32.mrb[0].mxu0
      %v829 = vadd.f32 %v677, %v828
      %v830 = vpop.f32.mrb[0].mxu0
      %v831 = vadd.f32 %v681, %v830
      %v832 = vpop.f32.mrb[0].mxu0
      %v833 = vadd.f32 %v677, %v832
      %v834 = vpop.f32.mrb[0].mxu0
      %v835 = vadd.f32 %v681, %v834
      %836 = vdwg.mxu0
      %v837 = vmax.f32 %v799, 0.0
      %v838 = vmax.f32 %v801, 0.0
      %v839 = vmax.f32 %v803, 0.0
      %v840 = vmax.f32 %v805, 0.0
      %v841 = vmax.f32 %v809, 0.0
      %v842 = vmax.f32 %v811, 0.0
      %v843 = vmax.f32 %v813, 0.0
      %v844 = vmax.f32 %v815, 0.0
      %v845 = vmax.f32 %v819, 0.0
      %v846 = vmax.f32 %v821, 0.0
      %v847 = vmax.f32 %v823, 0.0
      %v848 = vmax.f32 %v825, 0.0
      %v849 = vmax.f32 %v829, 0.0
      %v850 = vmax.f32 %v831, 0.0
      %v851 = vmax.f32 %v833, 0.0
      %v852 = vmax.f32 %v835, 0.0
      %v853 = vadd.f32 %v837, %v839
      %v854 = vadd.f32 %v853, %v841
      %v855 = vadd.f32 %v854, %v843
      %v856 = vadd.f32 %v855, %v845
      %v857 = vadd.f32 %v856, %v847
      %v858 = vadd.f32 %v857, %v849
      %v859 = vadd.f32 %v858, %v851
      %v860 = vrot.slane %v859, 4
      %v861 = vadd.f32 %v859, %v860
      %v862 = vrot.slane %v861, 2
      %v863 = vadd.f32 %v861, %v862
      %v864 = vrot.slane %v863, 1
      %v865 = vadd.f32 %v863, %v864
      %v866 = vadd.f32 %v838, %v840
      %v867 = vadd.f32 %v866, %v842
      %v868 = vadd.f32 %v867, %v844
      %v869 = vadd.f32 %v868, %v846
      %v870 = vadd.f32 %v869, %v848
      %v871 = vadd.f32 %v870, %v850
      %v872 = vadd.f32 %v871, %v852
      %v873 = vrot.slane %v872, 4
      %v874 = vadd.f32 %v872, %v873
      %v875 = vrot.slane %v874, 2
      %v876 = vadd.f32 %v874, %v875
      %v877 = vrot.slane %v876, 1
      %v878 = vadd.f32 %v876, %v877
      %879 = vst [vmem:[%s333] sm:$0xff] %v865
      %880 = vst [vmem:[%s333 + $0x8] sm:$0xff] %v878
      %p881 = scmp.lt.s32.totalorder %s22, 1
      %s882 = scalar_select %p881, %s22, 1
      %p883 = scmp.lt.s32.totalorder %s23, 0
      %s884 = scalar_select %p883, %s23, 0
      %s885 = smul.addr %s884, 2
      %s886 = smul.addr %s882, 2
      %s887 = sadd.s32 %s885, %s886
      %s888 = smul.addr %s887, 8
      %s889 = scalar_lea.vmem %s7, %s888
      // Predicated region
      $region49: #{pointnet2_wpos_forward.3} parent=47 // pred_check
        %p890 = pneg %p209
      $region50: #{pointnet2_wpos_forward.3} parent=47 // pred_check_branch
        %892 = sbr.rel (%p890) target = $region52
      $region51: #{pointnet2_wpos_forward.3} parent=47 // pred_region
        _
      $region52: #{pointnet2_wpos_forward.3} parent=47 // pred_fallthru
        _
    $region48: #{pointnet2_wpos_forward.3} parent=5 // pred_fallthru
      _
    %p893 = scmp.le.s32.totalorder 2, %s13
    // Predicated region
    $region53: #{pointnet2_wpos_forward.3} parent=5 // pred_check
      %p894 = pneg %p893
    $region54: #{pointnet2_wpos_forward.3} parent=5 // pred_check_branch
      %896 = sbr.rel (%p894) target = $region56
    $region55: #{pointnet2_wpos_forward.3} parent=5 // pred_region
      %s897 = ssub.s32 %s13, 2
      // Predicated region
      $region57: #{pointnet2_wpos_forward.3} parent=55 // pred_check
        %p898 = pneg %p215
      $region58: #{pointnet2_wpos_forward.3} parent=55 // pred_check_branch
        %900 = sbr.rel (%p898) target = $region60
      $region59: #{pointnet2_wpos_forward.3} parent=55 // pred_region
        %p901 = scmp.lt.s32.totalorder %s24, 1
        %s902 = scalar_select %p901, %s24, 1
        %p903 = scmp.lt.s32.totalorder %s25, 0
        %s904 = scalar_select %p903, %s25, 0
        %s905 = smul.addr %s904, 2
        %s906 = smul.addr %s902, 2
        %s907 = sadd.s32 %s905, %s906
        %s908 = smul.addr %s907, 8
        %s909 = scalar_lea.vmem %s7, %s908
      $region60: #{pointnet2_wpos_forward.3} parent=55 // pred_fallthru
        _
    $region56: #{pointnet2_wpos_forward.3} parent=5 // pred_fallthru
      _
  $region6: #{pointnet2_wpos_forward.3} parent=0 // loop_footer
    %s17 = sadd.s32 1, %s13
  $region7: #{pointnet2_wpos_forward.3} parent=0 // loop_footer_branch
    %12 = sbr.rel target = $region3
  $region8: #{pointnet2_wpos_forward.3} parent=0 // loop_exit
    _

// kernel: pointnet2_wpos_forward.5
$region0: #{pointnet2_wpos_forward.5}
  #allocation0 [shape = 'u32[]', space=smem, size = 0x4, offset = 0x4, fixed_abs, tag = 'smem constant byte address 0x4 - core index']
  #allocation1 [shape = 'u32[144,128]{1,0:T(1,128)}', space=vmem, size = 0x12000, scoped, tag = 'internal scratch']
  #allocation2 [shape = 'f32[1,1]{1,0:T(1,128)S(1)}', space=vmem, size = 0x200, scoped, tag = 'scoped memory for pointnet2_wpos_forward.5']
  %s0 = inlined_call_operand.vmem [shape: f32[2,3,64], index: 0, kind: input, shape index: {}]
  %s1 = inlined_call_operand.vmem [shape: f32[2,256,3], index: 1, kind: input, shape index: {}]
  %s2 = inlined_call_operand.vmem [shape: f32[2,256,1], index: 2, kind: input, shape index: {}]
  %s3 = inlined_call_operand.vmem [shape: bf16[256,256], index: 3, kind: input, shape index: {}]
  %s4 = inlined_call_operand.vmem [shape: f32[256,1], index: 4, kind: input, shape index: {}]
  %s5 = inlined_call_operand.vmem [shape: f32[256,1], index: 5, kind: input, shape index: {}]
  %s6 = inlined_call_operand.<no memory space> [shape: f32[1,1], index: 6, kind: input, shape index: {}]
  %s7 = inlined_call_operand.hbm [shape: f32[2,1,64], index: 7, kind: output, shape index: {}]
  %s8 = sld [smem:[#allocation0]]
  $region61: #{pointnet2_wpos_forward.5} parent=0
    _
  %s10 = ssub.s32 1, %s8
  %s11 = scalar_select 0, %s10, %s8
  %v12 = vstv %s6
  %13 = vst [vmem:[#allocation2] sm:$0x1] %v12
  $region1: #{pointnet2_wpos_forward.5} parent=0
    #allocation3 [shape = 'u8[1024]{0}', space=vmem, size = 0x400, scoped, tag = 'output window, operand 0']
    #allocation4 [shape = 's32[2]{0}', space=sflag, size = 0x8, scoped, tag = 'scoped memory for pointnet2_wpos_forward.5']
    %14 = vsyncpa [#allocation4], 0
    %s15 = scalar_lea.sflag [#allocation4], 1
    %16 = vsyncpa %s15, 0
    loop: start=0, step=1, limit=4
    $region2: #{pointnet2_wpos_forward.5} parent=1 // loop_pre_header
      _
    $region3: #{pointnet2_wpos_forward.5} parent=1 // loop_header
      %s18 = sphi 0, %s22
      %p19 = scmp.ge.s32.totalorder %s18, 4
      %s25 = sphi 0, %s37
      %s26 = sphi 0, %s33
      %s27 = sphi 0, %s25
      %s28 = sphi 0, %s26
      %s29 = sphi 0, %s27
      %s30 = sphi 0, %s28
      %s42 = sphi 0, %s44
      %s45 = sphi 0, %s42
      %s46 = sphi 0, %s45
      %s62 = sphi 0, %s46
      %s68 = sphi 0, %s70
      %s71 = sphi 0, %s68
      %s72 = sphi 0, %s71
      %s88 = sphi 0, %s72
      %s94 = sphi 0, %s96
      %s97 = sphi 0, %s94
      %s98 = sphi 0, %s97
      %s114 = sphi 0, %s98
      %s118 = sphi 0, %s118
      %s120 = sphi 0, %s118
      %s121 = sphi 0, %s120
      %s135 = sphi 0, %s121
      %s139 = sphi 0, %s139
      %s141 = sphi 0, %s139
      %s142 = sphi 0, %s141
      %s156 = sphi 0, %s142
      %s160 = sphi 0, %s160
      %s162 = sphi 0, %s160
      %s163 = sphi 0, %s162
      %s177 = sphi 0, %s163
      %s181 = sphi 0, %s181
      %s183 = sphi 0, %s181
      %s184 = sphi 0, %s183
      %s198 = sphi 0, %s184
      %s206 = sphi 0, %s208
      %s209 = sphi 0, %s206
      %s210 = sphi 0, %s209
      %s226 = sphi 0, %s210
    $region4: #{pointnet2_wpos_forward.5} parent=1 // loop_header_branch
      %21 = sbr.rel (%p19) target = $region8
    $region5: #{pointnet2_wpos_forward.5} parent=1 // loop_body
      %s23 = ssub.s32 %s18, 1
      %s24 = ssub.s32 %s18, 2
      %s31 = sadd.s32 1, %s26
      %p32 = scmp.ge.s32.totalorder %s31, 1
      %s33 = scalar_select %p32, 0, %s31
      %s34 = sadd.s32 1, %s25
      %s35 = scalar_select %p32, %s34, %s25
      %p36 = scmp.ge.s32.totalorder %s35, 2
      %s37 = scalar_select %p36, 0, %s35
      %s38 = ssub.s32 %s25, %s37
      %s39 = ssub.s32 %s26, %s33
      %s40 = sor.u32 %s38, %s39
      %p41 = scmp.eq.s32.totalorder %s40, 0
      %s43 = sadd.s32 %s42, 1
      %s44 = scalar_select %p41, %s42, %s43
      %p47 = pneg %p41
      %p48 = scmp.eq.s32.totalorder %s18, 1
      %p49 = por %p47, %p48
      %p50 = scmp.ne.s32.totalorder %s42, %s45
      %p51 = scmp.eq.s32.totalorder %s18, 0
      %p52 = por %p50, %p51
      %p53 = scmp.ne.s32.totalorder %s42, %s45
      %p54 = scmp.eq.s32.totalorder %s23, 1
      %p55 = por %p53, %p54
      %p56 = scmp.ne.s32.totalorder %s45, %s46
      %p57 = scmp.eq.s32.totalorder %s23, 0
      %p58 = por %p56, %p57
      %p59 = scmp.ne.s32.totalorder %s45, %s46
      %p60 = scmp.eq.s32.totalorder %s24, 1
      %p61 = por %p59, %p60
      %p63 = scmp.ne.s32.totalorder %s46, %s62
      %p64 = scmp.eq.s32.totalorder %s24, 0
      %p65 = por %p63, %p64
      %s66 = ssub.s32 %s25, %s37
      %p67 = scmp.eq.s32.totalorder %s66, 0
      %s69 = sadd.s32 %s68, 1
      %s70 = scalar_select %p67, %s68, %s69
      %p73 = pneg %p67
      %p74 = scmp.eq.s32.totalorder %s18, 1
      %p75 = por %p73, %p74
      %p76 = scmp.ne.s32.totalorder %s68, %s71
      %p77 = scmp.eq.s32.totalorder %s18, 0
      %p78 = por %p76, %p77
      %p79 = scmp.ne.s32.totalorder %s68, %s71
      %p80 = scmp.eq.s32.totalorder %s23, 1
      %p81 = por %p79, %p80
      %p82 = scmp.ne.s32.totalorder %s71, %s72
      %p83 = scmp.eq.s32.totalorder %s23, 0
      %p84 = por %p82, %p83
      %p85 = scmp.ne.s32.totalorder %s71, %s72
      %p86 = scmp.eq.s32.totalorder %s24, 1
      %p87 = por %p85, %p86
      %p89 = scmp.ne.s32.totalorder %s72, %s88
      %p90 = scmp.eq.s32.totalorder %s24, 0
      %p91 = por %p89, %p90
      %s92 = ssub.s32 %s25, %s37
      %p93 = scmp.eq.s32.totalorder %s92, 0
      %s95 = sadd.s32 %s94, 1
      %s96 = scalar_select %p93, %s94, %s95
      %p99 = pneg %p93
      %p100 = scmp.eq.s32.totalorder %s18, 1
      %p101 = por %p99, %p100
      %p102 = scmp.ne.s32.totalorder %s94, %s97
      %p103 = scmp.eq.s32.totalorder %s18, 0
      %p104 = por %p102, %p103
      %p105 = scmp.ne.s32.totalorder %s94, %s97
      %p106 = scmp.eq.s32.totalorder %s23, 1
      %p107 = por %p105, %p106
      %p108 = scmp.ne.s32.totalorder %s97, %s98
      %p109 = scmp.eq.s32.totalorder %s23, 0
      %p110 = por %p108, %p109
      %p111 = scmp.ne.s32.totalorder %s97, %s98
      %p112 = scmp.eq.s32.totalorder %s24, 1
      %p113 = por %p111, %p112
      %p115 = scmp.ne.s32.totalorder %s98, %s114
      %p116 = scmp.eq.s32.totalorder %s24, 0
      %p117 = por %p115, %p116
      %s119 = sadd.s32 %s118, 1
      %p122 = scmp.eq.s32.totalorder %s18, 1
      %p123 = scmp.ne.s32.totalorder %s118, %s120
      %p124 = scmp.eq.s32.totalorder %s18, 0
      %p125 = por %p123, %p124
      %p126 = scmp.ne.s32.totalorder %s118, %s120
      %p127 = scmp.eq.s32.totalorder %s23, 1
      %p128 = por %p126, %p127
      %p129 = scmp.ne.s32.totalorder %s120, %s121
      %p130 = scmp.eq.s32.totalorder %s23, 0
      %p131 = por %p129, %p130
      %p132 = scmp.ne.s32.totalorder %s120, %s121
      %p133 = scmp.eq.s32.totalorder %s24, 1
      %p134 = por %p132, %p133
      %p136 = scmp.ne.s32.totalorder %s121, %s135
      %p137 = scmp.eq.s32.totalorder %s24, 0
      %p138 = por %p136, %p137
      %s140 = sadd.s32 %s139, 1
      %p143 = scmp.eq.s32.totalorder %s18, 1
      %p144 = scmp.ne.s32.totalorder %s139, %s141
      %p145 = scmp.eq.s32.totalorder %s18, 0
      %p146 = por %p144, %p145
      %p147 = scmp.ne.s32.totalorder %s139, %s141
      %p148 = scmp.eq.s32.totalorder %s23, 1
      %p149 = por %p147, %p148
      %p150 = scmp.ne.s32.totalorder %s141, %s142
      %p151 = scmp.eq.s32.totalorder %s23, 0
      %p152 = por %p150, %p151
      %p153 = scmp.ne.s32.totalorder %s141, %s142
      %p154 = scmp.eq.s32.totalorder %s24, 1
      %p155 = por %p153, %p154
      %p157 = scmp.ne.s32.totalorder %s142, %s156
      %p158 = scmp.eq.s32.totalorder %s24, 0
      %p159 = por %p157, %p158
      %s161 = sadd.s32 %s160, 1
      %p164 = scmp.eq.s32.totalorder %s18, 1
      %p165 = scmp.ne.s32.totalorder %s160, %s162
      %p166 = scmp.eq.s32.totalorder %s18, 0
      %p167 = por %p165, %p166
      %p168 = scmp.ne.s32.totalorder %s160, %s162
      %p169 = scmp.eq.s32.totalorder %s23, 1
      %p170 = por %p168, %p169
      %p171 = scmp.ne.s32.totalorder %s162, %s163
      %p172 = scmp.eq.s32.totalorder %s23, 0
      %p173 = por %p171, %p172
      %p174 = scmp.ne.s32.totalorder %s162, %s163
      %p175 = scmp.eq.s32.totalorder %s24, 1
      %p176 = por %p174, %p175
      %p178 = scmp.ne.s32.totalorder %s163, %s177
      %p179 = scmp.eq.s32.totalorder %s24, 0
      %p180 = por %p178, %p179
      %s182 = sadd.s32 %s181, 1
      %p185 = scmp.eq.s32.totalorder %s18, 1
      %p186 = scmp.ne.s32.totalorder %s181, %s183
      %p187 = scmp.eq.s32.totalorder %s18, 0
      %p188 = por %p186, %p187
      %p189 = scmp.ne.s32.totalorder %s181, %s183
      %p190 = scmp.eq.s32.totalorder %s23, 1
      %p191 = por %p189, %p190
      %p192 = scmp.ne.s32.totalorder %s183, %s184
      %p193 = scmp.eq.s32.totalorder %s23, 0
      %p194 = por %p192, %p193
      %p195 = scmp.ne.s32.totalorder %s183, %s184
      %p196 = scmp.eq.s32.totalorder %s24, 1
      %p197 = por %p195, %p196
      %p199 = scmp.ne.s32.totalorder %s184, %s198
      %p200 = scmp.eq.s32.totalorder %s24, 0
      %p201 = por %p199, %p200
      %s202 = ssub.s32 %s25, %s37
      %s203 = ssub.s32 %s26, %s33
      %s204 = sor.u32 %s202, %s203
      %p205 = scmp.eq.s32.totalorder %s204, 0
      %s207 = sadd.s32 %s206, 1
      %s208 = scalar_select %p205, %s206, %s207
      %p211 = pneg %p205
      %p212 = scmp.eq.s32.totalorder %s18, 1
      %p213 = por %p211, %p212
      %p214 = scmp.ne.s32.totalorder %s206, %s209
      %p215 = scmp.eq.s32.totalorder %s18, 0
      %p216 = por %p214, %p215
      %p217 = scmp.ne.s32.totalorder %s206, %s209
      %p218 = scmp.eq.s32.totalorder %s23, 1
      %p219 = por %p217, %p218
      %p220 = scmp.ne.s32.totalorder %s209, %s210
      %p221 = scmp.eq.s32.totalorder %s23, 0
      %p222 = por %p220, %p221
      %p223 = scmp.ne.s32.totalorder %s209, %s210
      %p224 = scmp.eq.s32.totalorder %s24, 1
      %p225 = por %p223, %p224
      %p227 = scmp.ne.s32.totalorder %s210, %s226
      %p228 = scmp.eq.s32.totalorder %s24, 0
      %p229 = por %p227, %p228
      %p230 = scmp.le.s32.totalorder 1, %s18
      %p231 = scmp.lt.s32.totalorder %s18, 3
      %p232 = pnand %p230, %p231
      %p233 = pneg %p232
      // Predicated region
      $region9: #{pointnet2_wpos_forward.5} parent=5 // pred_check
        _
      $region10: #{pointnet2_wpos_forward.5} parent=5 // pred_check_branch
        %235 = sbr.rel (%p232) target = $region12
      $region11: #{pointnet2_wpos_forward.5} parent=5 // pred_region
        %s236 = ssub.s32 %s18, 1
        // Predicated region
        $region13: #{pointnet2_wpos_forward.5} parent=11 // pred_check
          %p237 = pneg %p131
        $region14: #{pointnet2_wpos_forward.5} parent=11 // pred_check_branch
          %239 = sbr.rel (%p237) target = $region16
        $region15: #{pointnet2_wpos_forward.5} parent=11 // pred_region
          _
        $region16: #{pointnet2_wpos_forward.5} parent=11 // pred_fallthru
          _
        // Predicated region
        $region17: #{pointnet2_wpos_forward.5} parent=11 // pred_check
          %p240 = pneg %p152
        $region18: #{pointnet2_wpos_forward.5} parent=11 // pred_check_branch
          %242 = sbr.rel (%p240) target = $region20
        $region19: #{pointnet2_wpos_forward.5} parent=11 // pred_region
          _
        $region20: #{pointnet2_wpos_forward.5} parent=11 // pred_fallthru
          _
        // Predicated region
        $region21: #{pointnet2_wpos_forward.5} parent=11 // pred_check
          %p243 = pneg %p173
        $region22: #{pointnet2_wpos_forward.5} parent=11 // pred_check_branch
          %245 = sbr.rel (%p243) target = $region24
        $region23: #{pointnet2_wpos_forward.5} parent=11 // pred_region
          _
        $region24: #{pointnet2_wpos_forward.5} parent=11 // pred_fallthru
          _
        // Predicated region
        $region25: #{pointnet2_wpos_forward.5} parent=11 // pred_check
          %p246 = pneg %p194
        $region26: #{pointnet2_wpos_forward.5} parent=11 // pred_check_branch
          %248 = sbr.rel (%p246) target = $region28
        $region27: #{pointnet2_wpos_forward.5} parent=11 // pred_region
          _
        $region28: #{pointnet2_wpos_forward.5} parent=11 // pred_fallthru
          _
      $region12: #{pointnet2_wpos_forward.5} parent=5 // pred_fallthru
        _
      %p249 = scmp.lt.s32.totalorder %s18, 2
      // Predicated region
      $region29: #{pointnet2_wpos_forward.5} parent=5 // pred_check
        %p250 = pneg %p249
      $region30: #{pointnet2_wpos_forward.5} parent=5 // pred_check_branch
        %252 = sbr.rel (%p250) target = $region32
      $region31: #{pointnet2_wpos_forward.5} parent=5 // pred_region
        // Predicated region
        $region33: #{pointnet2_wpos_forward.5} parent=31 // pred_check
          %p253 = pneg %p52
        $region34: #{pointnet2_wpos_forward.5} parent=31 // pred_check_branch
          %255 = sbr.rel (%p253) target = $region36
        $region35: #{pointnet2_wpos_forward.5} parent=31 // pred_region
          %p256 = scmp.lt.s32.totalorder %s25, 1
          %s257 = scalar_select %p256, %s25, 1
          %p258 = scmp.lt.s32.totalorder %s26, 0
          %s259 = scalar_select %p258, %s26, 0
          %s260 = sadd.s32 %s259, %s257
          %s261 = smul.addr %s260, 4
          %s262 = scalar_lea.vmem %s0, %s261
        $region36: #{pointnet2_wpos_forward.5} parent=31 // pred_fallthru
          _
        // Predicated region
        $region37: #{pointnet2_wpos_forward.5} parent=31 // pred_check
          %p263 = pneg %p78
        $region38: #{pointnet2_wpos_forward.5} parent=31 // pred_check_branch
          %265 = sbr.rel (%p263) target = $region40
        $region39: #{pointnet2_wpos_forward.5} parent=31 // pred_region
          %p266 = scmp.lt.s32.totalorder %s25, 1
          %s267 = scalar_select %p266, %s25, 1
          %s268 = smul.addr %s267, 32
          %s269 = smul.addr %s268, 8
          %s270 = scalar_lea.vmem %s1, %s269
        $region40: #{pointnet2_wpos_forward.5} parent=31 // pred_fallthru
          _
        // Predicated region
        $region41: #{pointnet2_wpos_forward.5} parent=31 // pred_check
          %p271 = pneg %p104
        $region42: #{pointnet2_wpos_forward.5} parent=31 // pred_check_branch
          %273 = sbr.rel (%p271) target = $region44
        $region43: #{pointnet2_wpos_forward.5} parent=31 // pred_region
          %p274 = scmp.lt.s32.totalorder %s25, 1
          %s275 = scalar_select %p274, %s25, 1
          %s276 = smul.addr %s275, 32
          %s277 = smul.addr %s276, 8
          %s278 = scalar_lea.vmem %s2, %s277
        $region44: #{pointnet2_wpos_forward.5} parent=31 // pred_fallthru
          _
      $region32: #{pointnet2_wpos_forward.5} parent=5 // pred_fallthru
        _
      %p279 = scmp.le.s32.totalorder 1, %s18
      %p280 = scmp.lt.s32.totalorder %s18, 3
      %p281 = pnand %p279, %p280
      %p282 = pneg %p281
      // Predicated region
      $region45: #{pointnet2_wpos_forward.5} parent=5 // pred_check
        _
      $region46: #{pointnet2_wpos_forward.5} parent=5 // pred_check_branch
        %284 = sbr.rel (%p281) target = $region48
      $region47: #{pointnet2_wpos_forward.5} parent=5 // pred_region
        %s285 = ssub.s32 %s18, 1
        %p286 = scmp.lt.s32.totalorder %s27, 1
        %s287 = scalar_select %p286, %s27, 1
        %p288 = scmp.lt.s32.totalorder %s28, 0
        %s289 = scalar_select %p288, %s28, 0
        %s290 = sadd.s32 %s289, %s287
        %s291 = smul.addr %s290, 4
        %s292 = scalar_lea.vmem %s0, %s291
        %p293 = pneg %p58
        %p294 = pneg %p55
        %p295 = scmp.lt.s32.totalorder %s27, 1
        %s296 = scalar_select %p295, %s27, 1
        %s297 = smul.addr %s296, 32
        %s298 = smul.addr %s297, 8
        %s299 = scalar_lea.vmem %s1, %s298
        %p300 = pneg %p84
        %p301 = pneg %p81
        %p302 = scmp.lt.s32.totalorder %s27, 1
        %s303 = scalar_select %p302, %s27, 1
        %s304 = smul.addr %s303, 32
        %s305 = smul.addr %s304, 8
        %s306 = scalar_lea.vmem %s2, %s305
        %p307 = pneg %p110
        %p308 = pneg %p107
        %p309 = pneg %p131
        %p310 = pneg %p128
        %p311 = pneg %p152
        %p312 = pneg %p149
        %p313 = pneg %p173
        %p314 = pneg %p170
        %p315 = pneg %p194
        %p316 = pneg %p191
        %p317 = pneg %p222
        %p318 = pneg %p219
        %s319 = sand.u32 %s209, 1
        %s320 = scalar_lea.sflag [#allocation4], %s319
        %s321 = sand.u32 %s209, 1
        %s322 = scalar_lea.vmem [#allocation3], %s321
        %p323 = scmp.lt.s32.totalorder %s27, 1
        %s324 = scalar_select %p323, %s27, 1
        %p325 = scmp.lt.s32.totalorder %s28, 0
        %s326 = scalar_select %p325, %s28, 0
        %s327 = sadd.s32 %s326, %s324
        %s328 = smul.addr %s327, 4
        %s329 = scalar_lea.vmem %s0, %s328
        %p330 = scmp.lt.s32.totalorder %s27, 1
        %s331 = scalar_select %p330, %s27, 1
        %s332 = smul.addr %s331, 32
        %s333 = smul.addr %s332, 8
        %s334 = scalar_lea.vmem %s1, %s333
        %p335 = scmp.lt.s32.totalorder %s27, 1
        %s336 = scalar_select %p335, %s27, 1
        %s337 = smul.addr %s336, 32
        %s338 = smul.addr %s337, 8
        %s339 = scalar_lea.vmem %s2, %s338
        %v341 = vld [vmem:[%s329] sm:$0x7]
        %v342 = vld [vmem:[%s334] sm:$0xff]
        %v343 = vld [vmem:[%s334 + $0x8] sm:$0xff]
        %v344 = vld [vmem:[%s334 + $0x10] sm:$0xff]
        %v345 = vld [vmem:[%s334 + $0x18] sm:$0xff]
        %v346 = vld [vmem:[%s334 + $0x20] sm:$0xff]
        %v347 = vld [vmem:[%s334 + $0x28] sm:$0xff]
        %v348 = vld [vmem:[%s334 + $0x30] sm:$0xff]
        %v349 = vld [vmem:[%s334 + $0x38] sm:$0xff]
        %v350 = vld [vmem:[%s334 + $0x40] sm:$0xff]
        %v351 = vld [vmem:[%s334 + $0x48] sm:$0xff]
        %v352 = vld [vmem:[%s334 + $0x50] sm:$0xff]
        %v353 = vld [vmem:[%s334 + $0x58] sm:$0xff]
        %v354 = vld [vmem:[%s334 + $0x60] sm:$0xff]
        %v355 = vld [vmem:[%s334 + $0x68] sm:$0xff]
        %v356 = vld [vmem:[%s334 + $0x70] sm:$0xff]
        %v357 = vld [vmem:[%s334 + $0x78] sm:$0xff]
        %v358 = vld [vmem:[%s334 + $0x80] sm:$0xff]
        %v359 = vld [vmem:[%s334 + $0x88] sm:$0xff]
        %v360 = vld [vmem:[%s334 + $0x90] sm:$0xff]
        %v361 = vld [vmem:[%s334 + $0x98] sm:$0xff]
        %v362 = vld [vmem:[%s334 + $0xa0] sm:$0xff]
        %v363 = vld [vmem:[%s334 + $0xa8] sm:$0xff]
        %v364 = vld [vmem:[%s334 + $0xb0] sm:$0xff]
        %v365 = vld [vmem:[%s334 + $0xb8] sm:$0xff]
        %v366 = vld [vmem:[%s334 + $0xc0] sm:$0xff]
        %v367 = vld [vmem:[%s334 + $0xc8] sm:$0xff]
        %v368 = vld [vmem:[%s334 + $0xd0] sm:$0xff]
        %v369 = vld [vmem:[%s334 + $0xd8] sm:$0xff]
        %v370 = vld [vmem:[%s334 + $0xe0] sm:$0xff]
        %v371 = vld [vmem:[%s334 + $0xe8] sm:$0xff]
        %v372 = vld [vmem:[%s334 + $0xf0] sm:$0xff]
        %v373 = vld [vmem:[%s334 + $0xf8] sm:$0xff]
        %375 = vset.pattern.permute.xlu0 0
        %376 = vperm.xlu0 %375, %v342
        %v377 = vpop.permute.xlu0 %376
        %380 = vset.pattern.permute.xlu0 0
        %381 = vperm.xlu0 %380, %v343
        %v382 = vpop.permute.xlu0 %381
        %385 = vset.pattern.permute.xlu0 0
        %386 = vperm.xlu0 %385, %v344
        %v387 = vpop.permute.xlu0 %386
        %390 = vset.pattern.permute.xlu0 0
        %391 = vperm.xlu0 %390, %v345
        %v392 = vpop.permute.xlu0 %391
        %395 = vset.pattern.permute.xlu0 0
        %396 = vperm.xlu0 %395, %v346
        %v397 = vpop.permute.xlu0 %396
        %400 = vset.pattern.permute.xlu0 0
        %401 = vperm.xlu0 %400, %v347
        %v402 = vpop.permute.xlu0 %401
        %405 = vset.pattern.permute.xlu0 0
        %406 = vperm.xlu0 %405, %v348
        %v407 = vpop.permute.xlu0 %406
        %410 = vset.pattern.permute.xlu0 0
        %411 = vperm.xlu0 %410, %v349
        %v412 = vpop.permute.xlu0 %411
        %415 = vset.pattern.permute.xlu0 0
        %416 = vperm.xlu0 %415, %v350
        %v417 = vpop.permute.xlu0 %416
        %420 = vset.pattern.permute.xlu0 0
        %421 = vperm.xlu0 %420, %v351
        %v422 = vpop.permute.xlu0 %421
        %425 = vset.pattern.permute.xlu0 0
        %426 = vperm.xlu0 %425, %v352
        %v427 = vpop.permute.xlu0 %426
        %430 = vset.pattern.permute.xlu0 0
        %431 = vperm.xlu0 %430, %v353
        %v432 = vpop.permute.xlu0 %431
        %435 = vset.pattern.permute.xlu0 0
        %436 = vperm.xlu0 %435, %v354
        %v437 = vpop.permute.xlu0 %436
        %440 = vset.pattern.permute.xlu0 0
        %441 = vperm.xlu0 %440, %v355
        %v442 = vpop.permute.xlu0 %441
        %445 = vset.pattern.permute.xlu0 0
        %446 = vperm.xlu0 %445, %v356
        %v447 = vpop.permute.xlu0 %446
        %450 = vset.pattern.permute.xlu0 0
        %451 = vperm.xlu0 %450, %v357
        %v452 = vpop.permute.xlu0 %451
        %455 = vset.pattern.permute.xlu0 0
        %456 = vperm.xlu0 %455, %v358
        %v457 = vpop.permute.xlu0 %456
        %460 = vset.pattern.permute.xlu0 0
        %461 = vperm.xlu0 %460, %v359
        %v462 = vpop.permute.xlu0 %461
        %465 = vset.pattern.permute.xlu0 0
        %466 = vperm.xlu0 %465, %v360
        %v467 = vpop.permute.xlu0 %466
        %470 = vset.pattern.permute.xlu0 0
        %471 = vperm.xlu0 %470, %v361
        %v472 = vpop.permute.xlu0 %471
        %475 = vset.pattern.permute.xlu0 0
        %476 = vperm.xlu0 %475, %v362
        %v477 = vpop.permute.xlu0 %476
        %480 = vset.pattern.permute.xlu0 0
        %481 = vperm.xlu0 %480, %v363
        %v482 = vpop.permute.xlu0 %481
        %485 = vset.pattern.permute.xlu0 0
        %486 = vperm.xlu0 %485, %v364
        %v487 = vpop.permute.xlu0 %486
        %490 = vset.pattern.permute.xlu0 0
        %491 = vperm.xlu0 %490, %v365
        %v492 = vpop.permute.xlu0 %491
        %495 = vset.pattern.permute.xlu0 0
        %496 = vperm.xlu0 %495, %v366
        %v497 = vpop.permute.xlu0 %496
        %500 = vset.pattern.permute.xlu0 0
        %501 = vperm.xlu0 %500, %v367
        %v502 = vpop.permute.xlu0 %501
        %505 = vset.pattern.permute.xlu0 0
        %506 = vperm.xlu0 %505, %v368
        %v507 = vpop.permute.xlu0 %506
        %510 = vset.pattern.permute.xlu0 0
        %511 = vperm.xlu0 %510, %v369
        %v512 = vpop.permute.xlu0 %511
        %515 = vset.pattern.permute.xlu0 0
        %516 = vperm.xlu0 %515, %v370
        %v517 = vpop.permute.xlu0 %516
        %520 = vset.pattern.permute.xlu0 0
        %521 = vperm.xlu0 %520, %v371
        %v522 = vpop.permute.xlu0 %521
        %525 = vset.pattern.permute.xlu0 0
        %526 = vperm.xlu0 %525, %v372
        %v527 = vpop.permute.xlu0 %526
        %530 = vset.pattern.permute.xlu0 0
        %531 = vperm.xlu0 %530, %v373
        %v532 = vpop.permute.xlu0 %531
        %v534 = vlaneseq
        %v535 = vshrl.u32 %v534, 7
        %v536 = vsub.s32 0, %v535
        %v537 = vrot.slane %v341, %v536
        %v538 = vmul.f32 %v377, %v537
        %v539 = vmul.f32 %v382, %v537
        %v540 = vmul.f32 %v387, %v537
        %v541 = vmul.f32 %v392, %v537
        %v542 = vmul.f32 %v397, %v537
        %v543 = vmul.f32 %v402, %v537
        %v544 = vmul.f32 %v407, %v537
        %v545 = vmul.f32 %v412, %v537
        %v546 = vmul.f32 %v417, %v537
        %v547 = vmul.f32 %v422, %v537
        %v548 = vmul.f32 %v427, %v537
        %v549 = vmul.f32 %v432, %v537
        %v550 = vmul.f32 %v437, %v537
        %v551 = vmul.f32 %v442, %v537
        %v552 = vmul.f32 %v447, %v537
        %v553 = vmul.f32 %v452, %v537
        %v554 = vmul.f32 %v457, %v537
        %v555 = vmul.f32 %v462, %v537
        %v556 = vmul.f32 %v467, %v537
        %v557 = vmul.f32 %v472, %v537
        %v558 = vmul.f32 %v477, %v537
        %v559 = vmul.f32 %v482, %v537
        %v560 = vmul.f32 %v487, %v537
        %v561 = vmul.f32 %v492, %v537
        %v562 = vmul.f32 %v497, %v537
        %v563 = vmul.f32 %v502, %v537
        %v564 = vmul.f32 %v507, %v537
        %v565 = vmul.f32 %v512, %v537
        %v566 = vmul.f32 %v517, %v537
        %v567 = vmul.f32 %v522, %v537
        %v568 = vmul.f32 %v527, %v537
        %v569 = vmul.f32 %v532, %v537
        %570 = vset.pattern.permute.xlu0 1
        %571 = vperm.xlu0 %570, %v342
        %v572 = vpop.permute.xlu0 %571
        %574 = vset.pattern.permute.xlu0 1
        %575 = vperm.xlu0 %574, %v343
        %v576 = vpop.permute.xlu0 %575
        %578 = vset.pattern.permute.xlu0 1
        %579 = vperm.xlu0 %578, %v344
        %v580 = vpop.permute.xlu0 %579
        %582 = vset.pattern.permute.xlu0 1
        %583 = vperm.xlu0 %582, %v345
        %v584 = vpop.permute.xlu0 %583
        %586 = vset.pattern.permute.xlu0 1
        %587 = vperm.xlu0 %586, %v346
        %v588 = vpop.permute.xlu0 %587
        %590 = vset.pattern.permute.xlu0 1
        %591 = vperm.xlu0 %590, %v347
        %v592 = vpop.permute.xlu0 %591
        %594 = vset.pattern.permute.xlu0 1
        %595 = vperm.xlu0 %594, %v348
        %v596 = vpop.permute.xlu0 %595
        %598 = vset.pattern.permute.xlu0 1
        %599 = vperm.xlu0 %598, %v349
        %v600 = vpop.permute.xlu0 %599
        %602 = vset.pattern.permute.xlu0 1
        %603 = vperm.xlu0 %602, %v350
        %v604 = vpop.permute.xlu0 %603
        %606 = vset.pattern.permute.xlu0 1
        %607 = vperm.xlu0 %606, %v351
        %v608 = vpop.permute.xlu0 %607
        %610 = vset.pattern.permute.xlu0 1
        %611 = vperm.xlu0 %610, %v352
        %v612 = vpop.permute.xlu0 %611
        %614 = vset.pattern.permute.xlu0 1
        %615 = vperm.xlu0 %614, %v353
        %v616 = vpop.permute.xlu0 %615
        %618 = vset.pattern.permute.xlu0 1
        %619 = vperm.xlu0 %618, %v354
        %v620 = vpop.permute.xlu0 %619
        %622 = vset.pattern.permute.xlu0 1
        %623 = vperm.xlu0 %622, %v355
        %v624 = vpop.permute.xlu0 %623
        %626 = vset.pattern.permute.xlu0 1
        %627 = vperm.xlu0 %626, %v356
        %v628 = vpop.permute.xlu0 %627
        %630 = vset.pattern.permute.xlu0 1
        %631 = vperm.xlu0 %630, %v357
        %v632 = vpop.permute.xlu0 %631
        %634 = vset.pattern.permute.xlu0 1
        %635 = vperm.xlu0 %634, %v358
        %v636 = vpop.permute.xlu0 %635
        %638 = vset.pattern.permute.xlu0 1
        %639 = vperm.xlu0 %638, %v359
        %v640 = vpop.permute.xlu0 %639
        %642 = vset.pattern.permute.xlu0 1
        %643 = vperm.xlu0 %642, %v360
        %v644 = vpop.permute.xlu0 %643
        %646 = vset.pattern.permute.xlu0 1
        %647 = vperm.xlu0 %646, %v361
        %v648 = vpop.permute.xlu0 %647
        %650 = vset.pattern.permute.xlu0 1
        %651 = vperm.xlu0 %650, %v362
        %v652 = vpop.permute.xlu0 %651
        %654 = vset.pattern.permute.xlu0 1
        %655 = vperm.xlu0 %654, %v363
        %v656 = vpop.permute.xlu0 %655
        %658 = vset.pattern.permute.xlu0 1
        %659 = vperm.xlu0 %658, %v364
        %v660 = vpop.permute.xlu0 %659
        %662 = vset.pattern.permute.xlu0 1
        %663 = vperm.xlu0 %662, %v365
        %v664 = vpop.permute.xlu0 %663
        %666 = vset.pattern.permute.xlu0 1
        %667 = vperm.xlu0 %666, %v366
        %v668 = vpop.permute.xlu0 %667
        %670 = vset.pattern.permute.xlu0 1
        %671 = vperm.xlu0 %670, %v367
        %v672 = vpop.permute.xlu0 %671
        %674 = vset.pattern.permute.xlu0 1
        %675 = vperm.xlu0 %674, %v368
        %v676 = vpop.permute.xlu0 %675
        %678 = vset.pattern.permute.xlu0 1
        %679 = vperm.xlu0 %678, %v369
        %v680 = vpop.permute.xlu0 %679
        %682 = vset.pattern.permute.xlu0 1
        %683 = vperm.xlu0 %682, %v370
        %v684 = vpop.permute.xlu0 %683
        %686 = vset.pattern.permute.xlu0 1
        %687 = vperm.xlu0 %686, %v371
        %v688 = vpop.permute.xlu0 %687
        %690 = vset.pattern.permute.xlu0 1
        %691 = vperm.xlu0 %690, %v372
        %v692 = vpop.permute.xlu0 %691
        %694 = vset.pattern.permute.xlu0 1
        %695 = vperm.xlu0 %694, %v373
        %v696 = vpop.permute.xlu0 %695
        %v698 = vlaneseq
        %v699 = vshrl.u32 %v698, 7
        %v700 = vsub.s32 1, %v699
        %v701 = vrot.slane %v341, %v700
        %v702 = vmul.f32 %v572, %v701
        %v703 = vmul.f32 %v576, %v701
        %v704 = vmul.f32 %v580, %v701
        %v705 = vmul.f32 %v584, %v701
        %v706 = vmul.f32 %v588, %v701
        %v707 = vmul.f32 %v592, %v701
        %v708 = vmul.f32 %v596, %v701
        %v709 = vmul.f32 %v600, %v701
        %v710 = vmul.f32 %v604, %v701
        %v711 = vmul.f32 %v608, %v701
        %v712 = vmul.f32 %v612, %v701
        %v713 = vmul.f32 %v616, %v701
        %v714 = vmul.f32 %v620, %v701
        %v715 = vmul.f32 %v624, %v701
        %v716 = vmul.f32 %v628, %v701
        %v717 = vmul.f32 %v632, %v701
        %v718 = vmul.f32 %v636, %v701
        %v719 = vmul.f32 %v640, %v701
        %v720 = vmul.f32 %v644, %v701
        %v721 = vmul.f32 %v648, %v701
        %v722 = vmul.f32 %v652, %v701
        %v723 = vmul.f32 %v656, %v701
        %v724 = vmul.f32 %v660, %v701
        %v725 = vmul.f32 %v664, %v701
        %v726 = vmul.f32 %v668, %v701
        %v727 = vmul.f32 %v672, %v701
        %v728 = vmul.f32 %v676, %v701
        %v729 = vmul.f32 %v680, %v701
        %v730 = vmul.f32 %v684, %v701
        %v731 = vmul.f32 %v688, %v701
        %v732 = vmul.f32 %v692, %v701
        %v733 = vmul.f32 %v696, %v701
        %v734 = vadd.f32 %v538, %v702
        %v735 = vadd.f32 %v539, %v703
        %v736 = vadd.f32 %v540, %v704
        %v737 = vadd.f32 %v541, %v705
        %v738 = vadd.f32 %v542, %v706
        %v739 = vadd.f32 %v543, %v707
        %v740 = vadd.f32 %v544, %v708
        %v741 = vadd.f32 %v545, %v709
        %v742 = vadd.f32 %v546, %v710
        %v743 = vadd.f32 %v547, %v711
        %v744 = vadd.f32 %v548, %v712
        %v745 = vadd.f32 %v549, %v713
        %v746 = vadd.f32 %v550, %v714
        %v747 = vadd.f32 %v551, %v715
        %v748 = vadd.f32 %v552, %v716
        %v749 = vadd.f32 %v553, %v717
        %v750 = vadd.f32 %v554, %v718
        %v751 = vadd.f32 %v555, %v719
        %v752 = vadd.f32 %v556, %v720
        %v753 = vadd.f32 %v557, %v721
        %v754 = vadd.f32 %v558, %v722
        %v755 = vadd.f32 %v559, %v723
        %v756 = vadd.f32 %v560, %v724
        %v757 = vadd.f32 %v561, %v725
        %v758 = vadd.f32 %v562, %v726
        %v759 = vadd.f32 %v563, %v727
        %v760 = vadd.f32 %v564, %v728
        %v761 = vadd.f32 %v565, %v729
        %v762 = vadd.f32 %v566, %v730
        %v763 = vadd.f32 %v567, %v731
        %v764 = vadd.f32 %v568, %v732
        %v765 = vadd.f32 %v569, %v733
        %766 = vset.pattern.permute.xlu0 2
        %767 = vperm.xlu0 %766, %v342
        %v768 = vpop.permute.xlu0 %767
        %770 = vset.pattern.permute.xlu0 2
        %771 = vperm.xlu0 %770, %v343
        %v772 = vpop.permute.xlu0 %771
        %774 = vset.pattern.permute.xlu0 2
        %775 = vperm.xlu0 %774, %v344
        %v776 = vpop.permute.xlu0 %775
        %778 = vset.pattern.permute.xlu0 2
        %779 = vperm.xlu0 %778, %v345
        %v780 = vpop.permute.xlu0 %779
        %782 = vset.pattern.permute.xlu0 2
        %783 = vperm.xlu0 %782, %v346
        %v784 = vpop.permute.xlu0 %783
        %786 = vset.pattern.permute.xlu0 2
        %787 = vperm.xlu0 %786, %v347
        %v788 = vpop.permute.xlu0 %787
        %790 = vset.pattern.permute.xlu0 2
        %791 = vperm.xlu0 %790, %v348
        %v792 = vpop.permute.xlu0 %791
        %794 = vset.pattern.permute.xlu0 2
        %795 = vperm.xlu0 %794, %v349
        %v796 = vpop.permute.xlu0 %795
        %798 = vset.pattern.permute.xlu0 2
        %799 = vperm.xlu0 %798, %v350
        %v800 = vpop.permute.xlu0 %799
        %802 = vset.pattern.permute.xlu0 2
        %803 = vperm.xlu0 %802, %v351
        %v804 = vpop.permute.xlu0 %803
        %806 = vset.pattern.permute.xlu0 2
        %807 = vperm.xlu0 %806, %v352
        %v808 = vpop.permute.xlu0 %807
        %810 = vset.pattern.permute.xlu0 2
        %811 = vperm.xlu0 %810, %v353
        %v812 = vpop.permute.xlu0 %811
        %814 = vset.pattern.permute.xlu0 2
        %815 = vperm.xlu0 %814, %v354
        %v816 = vpop.permute.xlu0 %815
        %818 = vset.pattern.permute.xlu0 2
        %819 = vperm.xlu0 %818, %v355
        %v820 = vpop.permute.xlu0 %819
        %822 = vset.pattern.permute.xlu0 2
        %823 = vperm.xlu0 %822, %v356
        %v824 = vpop.permute.xlu0 %823
        %826 = vset.pattern.permute.xlu0 2
        %827 = vperm.xlu0 %826, %v357
        %v828 = vpop.permute.xlu0 %827
        %830 = vset.pattern.permute.xlu0 2
        %831 = vperm.xlu0 %830, %v358
        %v832 = vpop.permute.xlu0 %831
        %834 = vset.pattern.permute.xlu0 2
        %835 = vperm.xlu0 %834, %v359
        %v836 = vpop.permute.xlu0 %835
        %838 = vset.pattern.permute.xlu0 2
        %839 = vperm.xlu0 %838, %v360
        %v840 = vpop.permute.xlu0 %839
        %842 = vset.pattern.permute.xlu0 2
        %843 = vperm.xlu0 %842, %v361
        %v844 = vpop.permute.xlu0 %843
        %846 = vset.pattern.permute.xlu0 2
        %847 = vperm.xlu0 %846, %v362
        %v848 = vpop.permute.xlu0 %847
        %850 = vset.pattern.permute.xlu0 2
        %851 = vperm.xlu0 %850, %v363
        %v852 = vpop.permute.xlu0 %851
        %854 = vset.pattern.permute.xlu0 2
        %855 = vperm.xlu0 %854, %v364
        %v856 = vpop.permute.xlu0 %855
        %858 = vset.pattern.permute.xlu0 2
        %859 = vperm.xlu0 %858, %v365
        %v860 = vpop.permute.xlu0 %859
        %862 = vset.pattern.permute.xlu0 2
        %863 = vperm.xlu0 %862, %v366
        %v864 = vpop.permute.xlu0 %863
        %866 = vset.pattern.permute.xlu0 2
        %867 = vperm.xlu0 %866, %v367
        %v868 = vpop.permute.xlu0 %867
        %870 = vset.pattern.permute.xlu0 2
        %871 = vperm.xlu0 %870, %v368
        %v872 = vpop.permute.xlu0 %871
        %874 = vset.pattern.permute.xlu0 2
        %875 = vperm.xlu0 %874, %v369
        %v876 = vpop.permute.xlu0 %875
        %878 = vset.pattern.permute.xlu0 2
        %879 = vperm.xlu0 %878, %v370
        %v880 = vpop.permute.xlu0 %879
        %882 = vset.pattern.permute.xlu0 2
        %883 = vperm.xlu0 %882, %v371
        %v884 = vpop.permute.xlu0 %883
        %886 = vset.pattern.permute.xlu0 2
        %887 = vperm.xlu0 %886, %v372
        %v888 = vpop.permute.xlu0 %887
        %890 = vset.pattern.permute.xlu0 2
        %891 = vperm.xlu0 %890, %v373
        %v892 = vpop.permute.xlu0 %891
        %v894 = vlaneseq
        %v895 = vshrl.u32 %v894, 7
        %v896 = vsub.s32 2, %v895
        %v897 = vrot.slane %v341, %v896
        %v898 = vmul.f32 %v768, %v897
        %v899 = vmul.f32 %v772, %v897
        %v900 = vmul.f32 %v776, %v897
        %v901 = vmul.f32 %v780, %v897
        %v902 = vmul.f32 %v784, %v897
        %v903 = vmul.f32 %v788, %v897
        %v904 = vmul.f32 %v792, %v897
        %v905 = vmul.f32 %v796, %v897
        %v906 = vmul.f32 %v800, %v897
        %v907 = vmul.f32 %v804, %v897
        %v908 = vmul.f32 %v808, %v897
        %v909 = vmul.f32 %v812, %v897
        %v910 = vmul.f32 %v816, %v897
        %v911 = vmul.f32 %v820, %v897
        %v912 = vmul.f32 %v824, %v897
        %v913 = vmul.f32 %v828, %v897
        %v914 = vmul.f32 %v832, %v897
        %v915 = vmul.f32 %v836, %v897
        %v916 = vmul.f32 %v840, %v897
        %v917 = vmul.f32 %v844, %v897
        %v918 = vmul.f32 %v848, %v897
        %v919 = vmul.f32 %v852, %v897
        %v920 = vmul.f32 %v856, %v897
        %v921 = vmul.f32 %v860, %v897
        %v922 = vmul.f32 %v864, %v897
        %v923 = vmul.f32 %v868, %v897
        %v924 = vmul.f32 %v872, %v897
        %v925 = vmul.f32 %v876, %v897
        %v926 = vmul.f32 %v880, %v897
        %v927 = vmul.f32 %v884, %v897
        %v928 = vmul.f32 %v888, %v897
        %v929 = vmul.f32 %v892, %v897
        %v930 = vadd.f32 %v734, %v898
        %v931 = vadd.f32 %v735, %v899
        %v932 = vadd.f32 %v736, %v900
        %v933 = vadd.f32 %v737, %v901
        %v934 = vadd.f32 %v738, %v902
        %v935 = vadd.f32 %v739, %v903
        %v936 = vadd.f32 %v740, %v904
        %v937 = vadd.f32 %v741, %v905
        %v938 = vadd.f32 %v742, %v906
        %v939 = vadd.f32 %v743, %v907
        %v940 = vadd.f32 %v744, %v908
        %v941 = vadd.f32 %v745, %v909
        %v942 = vadd.f32 %v746, %v910
        %v943 = vadd.f32 %v747, %v911
        %v944 = vadd.f32 %v748, %v912
        %v945 = vadd.f32 %v749, %v913
        %v946 = vadd.f32 %v750, %v914
        %v947 = vadd.f32 %v751, %v915
        %v948 = vadd.f32 %v752, %v916
        %v949 = vadd.f32 %v753, %v917
        %v950 = vadd.f32 %v754, %v918
        %v951 = vadd.f32 %v755, %v919
        %v952 = vadd.f32 %v756, %v920
        %v953 = vadd.f32 %v757, %v921
        %v954 = vadd.f32 %v758, %v922
        %v955 = vadd.f32 %v759, %v923
        %v956 = vadd.f32 %v760, %v924
        %v957 = vadd.f32 %v761, %v925
        %v958 = vadd.f32 %v762, %v926
        %v959 = vadd.f32 %v763, %v927
        %v960 = vadd.f32 %v764, %v928
        %v961 = vadd.f32 %v765, %v929
        %v962 = vld [vmem:[%s339] sm:$0xff]
        %v963 = vld [vmem:[%s339 + $0x8] sm:$0xff]
        %v964 = vld [vmem:[%s339 + $0x10] sm:$0xff]
        %v965 = vld [vmem:[%s339 + $0x18] sm:$0xff]
        %v966 = vld [vmem:[%s339 + $0x20] sm:$0xff]
        %v967 = vld [vmem:[%s339 + $0x28] sm:$0xff]
        %v968 = vld [vmem:[%s339 + $0x30] sm:$0xff]
        %v969 = vld [vmem:[%s339 + $0x38] sm:$0xff]
        %v970 = vld [vmem:[%s339 + $0x40] sm:$0xff]
        %v971 = vld [vmem:[%s339 + $0x48] sm:$0xff]
        %v972 = vld [vmem:[%s339 + $0x50] sm:$0xff]
        %v973 = vld [vmem:[%s339 + $0x58] sm:$0xff]
        %v974 = vld [vmem:[%s339 + $0x60] sm:$0xff]
        %v975 = vld [vmem:[%s339 + $0x68] sm:$0xff]
        %v976 = vld [vmem:[%s339 + $0x70] sm:$0xff]
        %v977 = vld [vmem:[%s339 + $0x78] sm:$0xff]
        %v978 = vld [vmem:[%s339 + $0x80] sm:$0xff]
        %v979 = vld [vmem:[%s339 + $0x88] sm:$0xff]
        %v980 = vld [vmem:[%s339 + $0x90] sm:$0xff]
        %v981 = vld [vmem:[%s339 + $0x98] sm:$0xff]
        %v982 = vld [vmem:[%s339 + $0xa0] sm:$0xff]
        %v983 = vld [vmem:[%s339 + $0xa8] sm:$0xff]
        %v984 = vld [vmem:[%s339 + $0xb0] sm:$0xff]
        %v985 = vld [vmem:[%s339 + $0xb8] sm:$0xff]
        %v986 = vld [vmem:[%s339 + $0xc0] sm:$0xff]
        %v987 = vld [vmem:[%s339 + $0xc8] sm:$0xff]
        %v988 = vld [vmem:[%s339 + $0xd0] sm:$0xff]
        %v989 = vld [vmem:[%s339 + $0xd8] sm:$0xff]
        %v990 = vld [vmem:[%s339 + $0xe0] sm:$0xff]
        %v991 = vld [vmem:[%s339 + $0xe8] sm:$0xff]
        %v992 = vld [vmem:[%s339 + $0xf0] sm:$0xff]
        %v993 = vld [vmem:[%s339 + $0xf8] sm:$0xff]
        %995 = vset.pattern.permute.xlu0 0
        %996 = vperm.xlu0 %995, %v962
        %v997 = vpop.permute.xlu0 %996
        %1000 = vset.pattern.permute.xlu0 0
        %1001 = vperm.xlu0 %1000, %v963
        %v1002 = vpop.permute.xlu0 %1001
        %1005 = vset.pattern.permute.xlu0 0
        %1006 = vperm.xlu0 %1005, %v964
        %v1007 = vpop.permute.xlu0 %1006
        %1010 = vset.pattern.permute.xlu0 0
        %1011 = vperm.xlu0 %1010, %v965
        %v1012 = vpop.permute.xlu0 %1011
        %1015 = vset.pattern.permute.xlu0 0
        %1016 = vperm.xlu0 %1015, %v966
        %v1017 = vpop.permute.xlu0 %1016
        %1020 = vset.pattern.permute.xlu0 0
        %1021 = vperm.xlu0 %1020, %v967
        %v1022 = vpop.permute.xlu0 %1021
        %1025 = vset.pattern.permute.xlu0 0
        %1026 = vperm.xlu0 %1025, %v968
        %v1027 = vpop.permute.xlu0 %1026
        %1030 = vset.pattern.permute.xlu0 0
        %1031 = vperm.xlu0 %1030, %v969
        %v1032 = vpop.permute.xlu0 %1031
        %1035 = vset.pattern.permute.xlu0 0
        %1036 = vperm.xlu0 %1035, %v970
        %v1037 = vpop.permute.xlu0 %1036
        %1040 = vset.pattern.permute.xlu0 0
        %1041 = vperm.xlu0 %1040, %v971
        %v1042 = vpop.permute.xlu0 %1041
        %1045 = vset.pattern.permute.xlu0 0
        %1046 = vperm.xlu0 %1045, %v972
        %v1047 = vpop.permute.xlu0 %1046
        %1050 = vset.pattern.permute.xlu0 0
        %1051 = vperm.xlu0 %1050, %v973
        %v1052 = vpop.permute.xlu0 %1051
        %1055 = vset.pattern.permute.xlu0 0
        %1056 = vperm.xlu0 %1055, %v974
        %v1057 = vpop.permute.xlu0 %1056
        %1060 = vset.pattern.permute.xlu0 0
        %1061 = vperm.xlu0 %1060, %v975
        %v1062 = vpop.permute.xlu0 %1061
        %1065 = vset.pattern.permute.xlu0 0
        %1066 = vperm.xlu0 %1065, %v976
        %v1067 = vpop.permute.xlu0 %1066
        %1070 = vset.pattern.permute.xlu0 0
        %1071 = vperm.xlu0 %1070, %v977
        %v1072 = vpop.permute.xlu0 %1071
        %1075 = vset.pattern.permute.xlu0 0
        %1076 = vperm.xlu0 %1075, %v978
        %v1077 = vpop.permute.xlu0 %1076
        %1080 = vset.pattern.permute.xlu0 0
        %1081 = vperm.xlu0 %1080, %v979
        %v1082 = vpop.permute.xlu0 %1081
        %1085 = vset.pattern.permute.xlu0 0
        %1086 = vperm.xlu0 %1085, %v980
        %v1087 = vpop.permute.xlu0 %1086
        %1090 = vset.pattern.permute.xlu0 0
        %1091 = vperm.xlu0 %1090, %v981
        %v1092 = vpop.permute.xlu0 %1091
        %1095 = vset.pattern.permute.xlu0 0
        %1096 = vperm.xlu0 %1095, %v982
        %v1097 = vpop.permute.xlu0 %1096
        %1100 = vset.pattern.permute.xlu0 0
        %1101 = vperm.xlu0 %1100, %v983
        %v1102 = vpop.permute.xlu0 %1101
        %1105 = vset.pattern.permute.xlu0 0
        %1106 = vperm.xlu0 %1105, %v984
        %v1107 = vpop.permute.xlu0 %1106
        %1110 = vset.pattern.permute.xlu0 0
        %1111 = vperm.xlu0 %1110, %v985
        %v1112 = vpop.permute.xlu0 %1111
        %1115 = vset.pattern.permute.xlu0 0
        %1116 = vperm.xlu0 %1115, %v986
        %v1117 = vpop.permute.xlu0 %1116
        %1120 = vset.pattern.permute.xlu0 0
        %1121 = vperm.xlu0 %1120, %v987
        %v1122 = vpop.permute.xlu0 %1121
        %1125 = vset.pattern.permute.xlu0 0
        %1126 = vperm.xlu0 %1125, %v988
        %v1127 = vpop.permute.xlu0 %1126
        %1130 = vset.pattern.permute.xlu0 0
        %1131 = vperm.xlu0 %1130, %v989
        %v1132 = vpop.permute.xlu0 %1131
        %1135 = vset.pattern.permute.xlu0 0
        %1136 = vperm.xlu0 %1135, %v990
        %v1137 = vpop.permute.xlu0 %1136
        %1140 = vset.pattern.permute.xlu0 0
        %1141 = vperm.xlu0 %1140, %v991
        %v1142 = vpop.permute.xlu0 %1141
        %1145 = vset.pattern.permute.xlu0 0
        %1146 = vperm.xlu0 %1145, %v992
        %v1147 = vpop.permute.xlu0 %1146
        %1150 = vset.pattern.permute.xlu0 0
        %1151 = vperm.xlu0 %1150, %v993
        %v1152 = vpop.permute.xlu0 %1151
        %v1154 = vadd.f32 %v930, %v997
        %v1155 = vadd.f32 %v931, %v1002
        %v1156 = vadd.f32 %v932, %v1007
        %v1157 = vadd.f32 %v933, %v1012
        %v1158 = vadd.f32 %v934, %v1017
        %v1159 = vadd.f32 %v935, %v1022
        %v1160 = vadd.f32 %v936, %v1027
        %v1161 = vadd.f32 %v937, %v1032
        %v1162 = vadd.f32 %v938, %v1037
        %v1163 = vadd.f32 %v939, %v1042
        %v1164 = vadd.f32 %v940, %v1047
        %v1165 = vadd.f32 %v941, %v1052
        %v1166 = vadd.f32 %v942, %v1057
        %v1167 = vadd.f32 %v943, %v1062
        %v1168 = vadd.f32 %v944, %v1067
        %v1169 = vadd.f32 %v945, %v1072
        %v1170 = vadd.f32 %v946, %v1077
        %v1171 = vadd.f32 %v947, %v1082
        %v1172 = vadd.f32 %v948, %v1087
        %v1173 = vadd.f32 %v949, %v1092
        %v1174 = vadd.f32 %v950, %v1097
        %v1175 = vadd.f32 %v951, %v1102
        %v1176 = vadd.f32 %v952, %v1107
        %v1177 = vadd.f32 %v953, %v1112
        %v1178 = vadd.f32 %v954, %v1117
        %v1179 = vadd.f32 %v955, %v1122
        %v1180 = vadd.f32 %v956, %v1127
        %v1181 = vadd.f32 %v957, %v1132
        %v1182 = vadd.f32 %v958, %v1137
        %v1183 = vadd.f32 %v959, %v1142
        %v1184 = vadd.f32 %v960, %v1147
        %v1185 = vadd.f32 %v961, %v1152
        %v1186 = vmax.f32 %v1154, 0.0
        %v1187 = vmax.f32 %v1155, 0.0
        %v1188 = vmax.f32 %v1156, 0.0
        %v1189 = vmax.f32 %v1157, 0.0
        %v1190 = vmax.f32 %v1158, 0.0
        %v1191 = vmax.f32 %v1159, 0.0
        %v1192 = vmax.f32 %v1160, 0.0
        %v1193 = vmax.f32 %v1161, 0.0
        %v1194 = vmax.f32 %v1162, 0.0
        %v1195 = vmax.f32 %v1163, 0.0
        %v1196 = vmax.f32 %v1164, 0.0
        %v1197 = vmax.f32 %v1165, 0.0
        %v1198 = vmax.f32 %v1166, 0.0
        %v1199 = vmax.f32 %v1167, 0.0
        %v1200 = vmax.f32 %v1168, 0.0
        %v1201 = vmax.f32 %v1169, 0.0
        %v1202 = vmax.f32 %v1170, 0.0
        %v1203 = vmax.f32 %v1171, 0.0
        %v1204 = vmax.f32 %v1172, 0.0
        %v1205 = vmax.f32 %v1173, 0.0
        %v1206 = vmax.f32 %v1174, 0.0
        %v1207 = vmax.f32 %v1175, 0.0
        %v1208 = vmax.f32 %v1176, 0.0
        %v1209 = vmax.f32 %v1177, 0.0
        %v1210 = vmax.f32 %v1178, 0.0
        %v1211 = vmax.f32 %v1179, 0.0
        %v1212 = vmax.f32 %v1180, 0.0
        %v1213 = vmax.f32 %v1181, 0.0
        %v1214 = vmax.f32 %v1182, 0.0
        %v1215 = vmax.f32 %v1183, 0.0
        %v1216 = vmax.f32 %v1184, 0.0
        %v1217 = vmax.f32 %v1185, 0.0
        %v1218 = vpack.c.bf16 %v1187, %v1186
        %v1219 = vpack.c.bf16 %v1189, %v1188
        %v1220 = vpack.c.bf16 %v1191, %v1190
        %v1221 = vpack.c.bf16 %v1193, %v1192
        %v1222 = vpack.c.bf16 %v1195, %v1194
        %v1223 = vpack.c.bf16 %v1197, %v1196
        %v1224 = vpack.c.bf16 %v1199, %v1198
        %v1225 = vpack.c.bf16 %v1201, %v1200
        %v1226 = vpack.c.bf16 %v1203, %v1202
        %v1227 = vpack.c.bf16 %v1205, %v1204
        %v1228 = vpack.c.bf16 %v1207, %v1206
        %v1229 = vpack.c.bf16 %v1209, %v1208
        %v1230 = vpack.c.bf16 %v1211, %v1210
        %v1231 = vpack.c.bf16 %v1213, %v1212
        %v1232 = vpack.c.bf16 %v1215, %v1214
        %v1233 = vpack.c.bf16 %v1217, %v1216
        %v1234 = vld [vmem:[%s3] sm:$0xff]
        %v1235 = vld [vmem:[%s3 + $0x8] sm:$0xff]
        %v1236 = vld [vmem:[%s3 + $0x10] sm:$0xff]
        %v1237 = vld [vmem:[%s3 + $0x18] sm:$0xff]
        %v1238 = vld [vmem:[%s3 + $0x20] sm:$0xff]
        %v1239 = vld [vmem:[%s3 + $0x28] sm:$0xff]
        %v1240 = vld [vmem:[%s3 + $0x30] sm:$0xff]
        %v1241 = vld [vmem:[%s3 + $0x38] sm:$0xff]
        %v1242 = vld [vmem:[%s3 + $0x40] sm:$0xff]
        %v1243 = vld [vmem:[%s3 + $0x48] sm:$0xff]
        %v1244 = vld [vmem:[%s3 + $0x50] sm:$0xff]
        %v1245 = vld [vmem:[%s3 + $0x58] sm:$0xff]
        %v1246 = vld [vmem:[%s3 + $0x60] sm:$0xff]
        %v1247 = vld [vmem:[%s3 + $0x68] sm:$0xff]
        %v1248 = vld [vmem:[%s3 + $0x70] sm:$0xff]
        %v1249 = vld [vmem:[%s3 + $0x78] sm:$0xff]
        %v1250 = vld [vmem:[%s3 + $0x80] sm:$0xff]
        %v1251 = vld [vmem:[%s3 + $0x88] sm:$0xff]
        %v1252 = vld [vmem:[%s3 + $0x90] sm:$0xff]
        %v1253 = vld [vmem:[%s3 + $0x98] sm:$0xff]
        %v1254 = vld [vmem:[%s3 + $0xa0] sm:$0xff]
        %v1255 = vld [vmem:[%s3 + $0xa8] sm:$0xff]
        %v1256 = vld [vmem:[%s3 + $0xb0] sm:$0xff]
        %v1257 = vld [vmem:[%s3 + $0xb8] sm:$0xff]
        %v1258 = vld [vmem:[%s3 + $0xc0] sm:$0xff]
        %v1259 = vld [vmem:[%s3 + $0xc8] sm:$0xff]
        %v1260 = vld [vmem:[%s3 + $0xd0] sm:$0xff]
        %v1261 = vld [vmem:[%s3 + $0xd8] sm:$0xff]
        %v1262 = vld [vmem:[%s3 + $0xe0] sm:$0xff]
        %v1263 = vld [vmem:[%s3 + $0xe8] sm:$0xff]
        %v1264 = vld [vmem:[%s3 + $0xf0] sm:$0xff]
        %v1265 = vld [vmem:[%s3 + $0xf8] sm:$0xff]
        %v1266 = vld [vmem:[%s4] sm:$0xff]
        %v1267 = vld [vmem:[%s4 + $0x8] sm:$0xff]
        %v1268 = vld [vmem:[%s4 + $0x10] sm:$0xff]
        %v1269 = vld [vmem:[%s4 + $0x18] sm:$0xff]
        %v1270 = vld [vmem:[%s4 + $0x20] sm:$0xff]
        %v1271 = vld [vmem:[%s4 + $0x28] sm:$0xff]
        %v1272 = vld [vmem:[%s4 + $0x30] sm:$0xff]
        %v1273 = vld [vmem:[%s4 + $0x38] sm:$0xff]
        %v1274 = vld [vmem:[%s4 + $0x40] sm:$0xff]
        %v1275 = vld [vmem:[%s4 + $0x48] sm:$0xff]
        %v1276 = vld [vmem:[%s4 + $0x50] sm:$0xff]
        %v1277 = vld [vmem:[%s4 + $0x58] sm:$0xff]
        %v1278 = vld [vmem:[%s4 + $0x60] sm:$0xff]
        %v1279 = vld [vmem:[%s4 + $0x68] sm:$0xff]
        %v1280 = vld [vmem:[%s4 + $0x70] sm:$0xff]
        %v1281 = vld [vmem:[%s4 + $0x78] sm:$0xff]
        %v1282 = vld [vmem:[%s4 + $0x80] sm:$0xff]
        %v1283 = vld [vmem:[%s4 + $0x88] sm:$0xff]
        %v1284 = vld [vmem:[%s4 + $0x90] sm:$0xff]
        %v1285 = vld [vmem:[%s4 + $0x98] sm:$0xff]
        %v1286 = vld [vmem:[%s4 + $0xa0] sm:$0xff]
        %v1287 = vld [vmem:[%s4 + $0xa8] sm:$0xff]
        %v1288 = vld [vmem:[%s4 + $0xb0] sm:$0xff]
        %v1289 = vld [vmem:[%s4 + $0xb8] sm:$0xff]
        %v1290 = vld [vmem:[%s4 + $0xc0] sm:$0xff]
        %v1291 = vld [vmem:[%s4 + $0xc8] sm:$0xff]
        %v1292 = vld [vmem:[%s4 + $0xd0] sm:$0xff]
        %v1293 = vld [vmem:[%s4 + $0xd8] sm:$0xff]
        %v1294 = vld [vmem:[%s4 + $0xe0] sm:$0xff]
        %v1295 = vld [vmem:[%s4 + $0xe8] sm:$0xff]
        %v1296 = vld [vmem:[%s4 + $0xf0] sm:$0xff]
        %v1297 = vld [vmem:[%s4 + $0xf8] sm:$0xff]
        %1299 = vset.pattern.permute.xlu0 0
        %1300 = vperm.xlu0 %1299, %v1266
        %v1301 = vpop.permute.xlu0 %1300
        %1304 = vset.pattern.permute.xlu0 0
        %1305 = vperm.xlu0 %1304, %v1267
        %v1306 = vpop.permute.xlu0 %1305
        %1309 = vset.pattern.permute.xlu0 0
        %1310 = vperm.xlu0 %1309, %v1268
        %v1311 = vpop.permute.xlu0 %1310
        %1314 = vset.pattern.permute.xlu0 0
        %1315 = vperm.xlu0 %1314, %v1269
        %v1316 = vpop.permute.xlu0 %1315
        %1319 = vset.pattern.permute.xlu0 0
        %1320 = vperm.xlu0 %1319, %v1270
        %v1321 = vpop.permute.xlu0 %1320
        %1324 = vset.pattern.permute.xlu0 0
        %1325 = vperm.xlu0 %1324, %v1271
        %v1326 = vpop.permute.xlu0 %1325
        %1329 = vset.pattern.permute.xlu0 0
        %1330 = vperm.xlu0 %1329, %v1272
        %v1331 = vpop.permute.xlu0 %1330
        %1334 = vset.pattern.permute.xlu0 0
        %1335 = vperm.xlu0 %1334, %v1273
        %v1336 = vpop.permute.xlu0 %1335
        %1339 = vset.pattern.permute.xlu0 0
        %1340 = vperm.xlu0 %1339, %v1274
        %v1341 = vpop.permute.xlu0 %1340
        %1344 = vset.pattern.permute.xlu0 0
        %1345 = vperm.xlu0 %1344, %v1275
        %v1346 = vpop.permute.xlu0 %1345
        %1349 = vset.pattern.permute.xlu0 0
        %1350 = vperm.xlu0 %1349, %v1276
        %v1351 = vpop.permute.xlu0 %1350
        %1354 = vset.pattern.permute.xlu0 0
        %1355 = vperm.xlu0 %1354, %v1277
        %v1356 = vpop.permute.xlu0 %1355
        %1359 = vset.pattern.permute.xlu0 0
        %1360 = vperm.xlu0 %1359, %v1278
        %v1361 = vpop.permute.xlu0 %1360
        %1364 = vset.pattern.permute.xlu0 0
        %1365 = vperm.xlu0 %1364, %v1279
        %v1366 = vpop.permute.xlu0 %1365
        %1369 = vset.pattern.permute.xlu0 0
        %1370 = vperm.xlu0 %1369, %v1280
        %v1371 = vpop.permute.xlu0 %1370
        %1374 = vset.pattern.permute.xlu0 0
        %1375 = vperm.xlu0 %1374, %v1281
        %v1376 = vpop.permute.xlu0 %1375
        %1379 = vset.pattern.permute.xlu0 0
        %1380 = vperm.xlu0 %1379, %v1282
        %v1381 = vpop.permute.xlu0 %1380
        %1384 = vset.pattern.permute.xlu0 0
        %1385 = vperm.xlu0 %1384, %v1283
        %v1386 = vpop.permute.xlu0 %1385
        %1389 = vset.pattern.permute.xlu0 0
        %1390 = vperm.xlu0 %1389, %v1284
        %v1391 = vpop.permute.xlu0 %1390
        %1394 = vset.pattern.permute.xlu0 0
        %1395 = vperm.xlu0 %1394, %v1285
        %v1396 = vpop.permute.xlu0 %1395
        %1399 = vset.pattern.permute.xlu0 0
        %1400 = vperm.xlu0 %1399, %v1286
        %v1401 = vpop.permute.xlu0 %1400
        %1404 = vset.pattern.permute.xlu0 0
        %1405 = vperm.xlu0 %1404, %v1287
        %v1406 = vpop.permute.xlu0 %1405
        %1409 = vset.pattern.permute.xlu0 0
        %1410 = vperm.xlu0 %1409, %v1288
        %v1411 = vpop.permute.xlu0 %1410
        %1414 = vset.pattern.permute.xlu0 0
        %1415 = vperm.xlu0 %1414, %v1289
        %v1416 = vpop.permute.xlu0 %1415
        %1419 = vset.pattern.permute.xlu0 0
        %1420 = vperm.xlu0 %1419, %v1290
        %v1421 = vpop.permute.xlu0 %1420
        %1424 = vset.pattern.permute.xlu0 0
        %1425 = vperm.xlu0 %1424, %v1291
        %v1426 = vpop.permute.xlu0 %1425
        %1429 = vset.pattern.permute.xlu0 0
        %1430 = vperm.xlu0 %1429, %v1292
        %v1431 = vpop.permute.xlu0 %1430
        %1434 = vset.pattern.permute.xlu0 0
        %1435 = vperm.xlu0 %1434, %v1293
        %v1436 = vpop.permute.xlu0 %1435
        %1439 = vset.pattern.permute.xlu0 0
        %1440 = vperm.xlu0 %1439, %v1294
        %v1441 = vpop.permute.xlu0 %1440
        %1444 = vset.pattern.permute.xlu0 0
        %1445 = vperm.xlu0 %1444, %v1295
        %v1446 = vpop.permute.xlu0 %1445
        %1449 = vset.pattern.permute.xlu0 0
        %1450 = vperm.xlu0 %1449, %v1296
        %v1451 = vpop.permute.xlu0 %1450
        %1454 = vset.pattern.permute.xlu0 0
        %1455 = vperm.xlu0 %1454, %v1297
        %v1456 = vpop.permute.xlu0 %1455
        %v1490 = vunpack.c.l.b16 %v1234
        %v1491 = vunpack.c.h.b16 %v1234
        %v1492 = vunpack.c.l.b16 %v1235
        %v1493 = vunpack.c.h.b16 %v1235
        %v1494 = vunpack.c.l.b16 %v1236
        %v1495 = vunpack.c.h.b16 %v1236
        %v1496 = vunpack.c.l.b16 %v1237
        %v1497 = vunpack.c.h.b16 %v1237
        %v1498 = vunpack.c.l.b16 %v1238
        %v1499 = vunpack.c.h.b16 %v1238
        %v1500 = vunpack.c.l.b16 %v1239
        %v1501 = vunpack.c.h.b16 %v1239
        %v1502 = vunpack.c.l.b16 %v1240
        %v1503 = vunpack.c.h.b16 %v1240
        %v1504 = vunpack.c.l.b16 %v1241
        %v1505 = vunpack.c.h.b16 %v1241
        %v1506 = vunpack.c.l.b16 %v1242
        %v1507 = vunpack.c.h.b16 %v1242
        %v1508 = vunpack.c.l.b16 %v1243
        %v1509 = vunpack.c.h.b16 %v1243
        %v1510 = vunpack.c.l.b16 %v1244
        %v1511 = vunpack.c.h.b16 %v1244
        %v1512 = vunpack.c.l.b16 %v1245
        %v1513 = vunpack.c.h.b16 %v1245
        %v1514 = vunpack.c.l.b16 %v1246
        %v1515 = vunpack.c.h.b16 %v1246
        %v1516 = vunpack.c.l.b16 %v1247
        %v1517 = vunpack.c.h.b16 %v1247
        %v1518 = vunpack.c.l.b16 %v1248
        %v1519 = vunpack.c.h.b16 %v1248
        %v1520 = vunpack.c.l.b16 %v1249
        %v1521 = vunpack.c.h.b16 %v1249
        %v1522 = vunpack.c.l.b16 %v1250
        %v1523 = vunpack.c.h.b16 %v1250
        %v1524 = vunpack.c.l.b16 %v1251
        %v1525 = vunpack.c.h.b16 %v1251
        %v1526 = vunpack.c.l.b16 %v1252
        %v1527 = vunpack.c.h.b16 %v1252
        %v1528 = vunpack.c.l.b16 %v1253
        %v1529 = vunpack.c.h.b16 %v1253
        %v1530 = vunpack.c.l.b16 %v1254
        %v1531 = vunpack.c.h.b16 %v1254
        %v1532 = vunpack.c.l.b16 %v1255
        %v1533 = vunpack.c.h.b16 %v1255
        %v1534 = vunpack.c.l.b16 %v1256
        %v1535 = vunpack.c.h.b16 %v1256
        %v1536 = vunpack.c.l.b16 %v1257
        %v1537 = vunpack.c.h.b16 %v1257
        %v1538 = vunpack.c.l.b16 %v1258
        %v1539 = vunpack.c.h.b16 %v1258
        %v1540 = vunpack.c.l.b16 %v1259
        %v1541 = vunpack.c.h.b16 %v1259
        %v1542 = vunpack.c.l.b16 %v1260
        %v1543 = vunpack.c.h.b16 %v1260
        %v1544 = vunpack.c.l.b16 %v1261
        %v1545 = vunpack.c.h.b16 %v1261
        %v1546 = vunpack.c.l.b16 %v1262
        %v1547 = vunpack.c.h.b16 %v1262
        %v1548 = vunpack.c.l.b16 %v1263
        %v1549 = vunpack.c.h.b16 %v1263
        %v1550 = vunpack.c.l.b16 %v1264
        %v1551 = vunpack.c.h.b16 %v1264
        %v1552 = vunpack.c.l.b16 %v1265
        %v1553 = vunpack.c.h.b16 %v1265
        %v1554 = vpack.c.b16 %v1492, %v1490
        %v1555 = vpack.c.b16 %v1493, %v1491
        %v1556 = vpack.c.b16 %v1496, %v1494
        %v1557 = vpack.c.b16 %v1497, %v1495
        %v1558 = vpack.c.b16 %v1500, %v1498
        %v1559 = vpack.c.b16 %v1501, %v1499
        %v1560 = vpack.c.b16 %v1504, %v1502
        %v1561 = vpack.c.b16 %v1505, %v1503
        %v1562 = vpack.c.b16 %v1508, %v1506
        %v1563 = vpack.c.b16 %v1509, %v1507
        %v1564 = vpack.c.b16 %v1512, %v1510
        %v1565 = vpack.c.b16 %v1513, %v1511
        %v1566 = vpack.c.b16 %v1516, %v1514
        %v1567 = vpack.c.b16 %v1517, %v1515
        %v1568 = vpack.c.b16 %v1520, %v1518
        %v1569 = vpack.c.b16 %v1521, %v1519
        %v1570 = vpack.c.b16 %v1524, %v1522
        %v1571 = vpack.c.b16 %v1525, %v1523
        %v1572 = vpack.c.b16 %v1528, %v1526
        %v1573 = vpack.c.b16 %v1529, %v1527
        %v1574 = vpack.c.b16 %v1532, %v1530
        %v1575 = vpack.c.b16 %v1533, %v1531
        %v1576 = vpack.c.b16 %v1536, %v1534
        %v1577 = vpack.c.b16 %v1537, %v1535
        %v1578 = vpack.c.b16 %v1540, %v1538
        %v1579 = vpack.c.b16 %v1541, %v1539
        %v1580 = vpack.c.b16 %v1544, %v1542
        %v1581 = vpack.c.b16 %v1545, %v1543
        %v1582 = vpack.c.b16 %v1548, %v1546
        %v1583 = vpack.c.b16 %v1549, %v1547
        %v1584 = vpack.c.b16 %v1552, %v1550
        %v1585 = vpack.c.b16 %v1553, %v1551
        %1618 = vmatprep.subr.bf16.mxu0 0
        %1619 = vmatpush1.bf16.msra.mxu0 %v1218
        %1620 = vmatprep.subr.bf16.mxu0 0
        %1621 = vmatpush1.bf16.msra.mxu0 %v1219
        %1622 = vmatprep.subr.bf16.mxu0 0
        %1623 = vmatpush1.bf16.msra.mxu0 %v1220
        %1624 = vmatprep.subr.bf16.mxu0 0
        %1625 = vmatpush1.bf16.msra.mxu0 %v1221
        %1626 = vmatprep.subr.bf16.mxu0 0
        %1627 = vmatpush1.bf16.msra.mxu0 %v1222
        %1628 = vmatprep.subr.bf16.mxu0 0
        %1629 = vmatpush1.bf16.msra.mxu0 %v1223
        %1630 = vmatprep.subr.bf16.mxu0 0
        %1631 = vmatpush1.bf16.msra.mxu0 %v1224
        %1632 = vmatprep.subr.bf16.mxu0 0
        %1633 = vmatpush1.bf16.msra.mxu0 %v1225
        %1634 = vmatprep.subr.bf16.mxu0 0
        %1635 = vmatpush1.bf16.msra.mxu0 %v1226
        %1636 = vmatprep.subr.bf16.mxu0 0
        %1637 = vmatpush1.bf16.msra.mxu0 %v1227
        %1638 = vmatprep.subr.bf16.mxu0 0
        %1639 = vmatpush1.bf16.msra.mxu0 %v1228
        %1640 = vmatprep.subr.bf16.mxu0 0
        %1641 = vmatpush1.bf16.msra.mxu0 %v1229
        %1642 = vmatprep.subr.bf16.mxu0 0
        %1643 = vmatpush1.bf16.msra.mxu0 %v1230
        %1644 = vmatprep.subr.bf16.mxu0 0
        %1645 = vmatpush1.bf16.msra.mxu0 %v1231
        %1646 = vmatprep.subr.bf16.mxu0 0
        %1647 = vmatpush1.bf16.msra.mxu0 %v1232
        %1648 = vmatprep.subr.bf16.mxu0 0
        %1649 = vmatpush1.bf16.msra.mxu0 %v1233
        %1650 = vmatprep.mubr.bf16.mxu0 %v1555
        %1651 = vmatmul.mubr.bf16.gmra.mrb[0].mxu0 %v1554
        %v1652 = vpop.f32.mrb[0].mxu0
        %v1653 = vadd.f32 %v1301, %v1652
        %v1654 = vpop.f32.mrb[0].mxu0
        %v1655 = vpop.f32.mrb[0].mxu0
        %v1656 = vadd.f32 %v1306, %v1655
        %v1657 = vpop.f32.mrb[0].mxu0
        %1658 = vmatprep.mubr.bf16.mxu0 %v1557
        %1659 = vmatmul.mubr.bf16.gmra.mrb[0].mxu0 %v1556
        %v1660 = vpop.f32.mrb[0].mxu0
        %v1661 = vadd.f32 %v1311, %v1660
        %v1662 = vpop.f32.mrb[0].mxu0
        %v1663 = vpop.f32.mrb[0].mxu0
        %v1664 = vadd.f32 %v1316, %v1663
        %v1665 = vpop.f32.mrb[0].mxu0
        %1666 = vmatprep.mubr.bf16.mxu0 %v1559
        %1667 = vmatmul.mubr.bf16.gmra.mrb[0].mxu0 %v1558
        %v1668 = vpop.f32.mrb[0].mxu0
        %v1669 = vadd.f32 %v1321, %v1668
        %v1670 = vpop.f32.mrb[0].mxu0
        %v1671 = vpop.f32.mrb[0].mxu0
        %v1672 = vadd.f32 %v1326, %v1671
        %v1673 = vpop.f32.mrb[0].mxu0
        %1674 = vmatprep.mubr.bf16.mxu0 %v1561
        %1675 = vmatmul.mubr.bf16.gmra.mrb[0].mxu0 %v1560
        %v1676 = vpop.f32.mrb[0].mxu0
        %v1677 = vadd.f32 %v1331, %v1676
        %v1678 = vpop.f32.mrb[0].mxu0
        %v1679 = vpop.f32.mrb[0].mxu0
        %v1680 = vadd.f32 %v1336, %v1679
        %v1681 = vpop.f32.mrb[0].mxu0
        %1682 = vmatprep.mubr.bf16.mxu0 %v1563
        %1683 = vmatmul.mubr.bf16.gmra.mrb[0].mxu0 %v1562
        %v1684 = vpop.f32.mrb[0].mxu0
        %v1685 = vadd.f32 %v1341, %v1684
        %v1686 = vpop.f32.mrb[0].mxu0
        %v1687 = vpop.f32.mrb[0].mxu0
        %v1688 = vadd.f32 %v1346, %v1687
        %v1689 = vpop.f32.mrb[0].mxu0
        %1690 = vmatprep.mubr.bf16.mxu0 %v1565
        %1691 = vmatmul.mubr.bf16.gmra.mrb[0].mxu0 %v1564
        %v1692 = vpop.f32.mrb[0].mxu0
        %v1693 = vadd.f32 %v1351, %v1692
        %v1694 = vpop.f32.mrb[0].mxu0
        %v1695 = vpop.f32.mrb[0].mxu0
        %v1696 = vadd.f32 %v1356, %v1695
        %v1697 = vpop.f32.mrb[0].mxu0
        %1698 = vmatprep.mubr.bf16.mxu0 %v1567
        %1699 = vmatmul.mubr.bf16.gmra.mrb[0].mxu0 %v1566
        %v1700 = vpop.f32.mrb[0].mxu0
        %v1701 = vadd.f32 %v1361, %v1700
        %v1702 = vpop.f32.mrb[0].mxu0
        %v1703 = vpop.f32.mrb[0].mxu0
        %v1704 = vadd.f32 %v1366, %v1703
        %v1705 = vpop.f32.mrb[0].mxu0
        %1706 = vmatprep.mubr.bf16.mxu0 %v1569
        %1707 = vmatmul.mubr.bf16.gmra.mrb[0].mxu0 %v1568
        %v1708 = vpop.f32.mrb[0].mxu0
        %v1709 = vadd.f32 %v1371, %v1708
        %v1710 = vpop.f32.mrb[0].mxu0
        %v1711 = vpop.f32.mrb[0].mxu0
        %v1712 = vadd.f32 %v1376, %v1711
        %v1713 = vpop.f32.mrb[0].mxu0
        %1714 = vmatprep.mubr.bf16.mxu0 %v1571
        %1715 = vmatmul.mubr.bf16.gmra.mrb[0].mxu0 %v1570
        %v1716 = vpop.f32.mrb[0].mxu0
        %v1717 = vadd.f32 %v1381, %v1716
        %v1718 = vpop.f32.mrb[0].mxu0
        %v1719 = vpop.f32.mrb[0].mxu0
        %v1720 = vadd.f32 %v1386, %v1719
        %v1721 = vpop.f32.mrb[0].mxu0
        %1722 = vmatprep.mubr.bf16.mxu0 %v1573
        %1723 = vmatmul.mubr.bf16.gmra.mrb[0].mxu0 %v1572
        %v1724 = vpop.f32.mrb[0].mxu0
        %v1725 = vadd.f32 %v1391, %v1724
        %v1726 = vpop.f32.mrb[0].mxu0
        %v1727 = vpop.f32.mrb[0].mxu0
        %v1728 = vadd.f32 %v1396, %v1727
        %v1729 = vpop.f32.mrb[0].mxu0
        %1730 = vmatprep.mubr.bf16.mxu0 %v1575
        %1731 = vmatmul.mubr.bf16.gmra.mrb[0].mxu0 %v1574
        %v1732 = vpop.f32.mrb[0].mxu0
        %v1733 = vadd.f32 %v1401, %v1732
        %v1734 = vpop.f32.mrb[0].mxu0
        %v1735 = vpop.f32.mrb[0].mxu0
        %v1736 = vadd.f32 %v1406, %v1735
        %v1737 = vpop.f32.mrb[0].mxu0
        %1738 = vmatprep.mubr.bf16.mxu0 %v1577
        %1739 = vmatmul.mubr.bf16.gmra.mrb[0].mxu0 %v1576
        %v1740 = vpop.f32.mrb[0].mxu0
        %v1741 = vadd.f32 %v1411, %v1740
        %v1742 = vpop.f32.mrb[0].mxu0
        %v1743 = vpop.f32.mrb[0].mxu0
        %v1744 = vadd.f32 %v1416, %v1743
        %v1745 = vpop.f32.mrb[0].mxu0
        %1746 = vmatprep.mubr.bf16.mxu0 %v1579
        %1747 = vmatmul.mubr.bf16.gmra.mrb[0].mxu0 %v1578
        %v1748 = vpop.f32.mrb[0].mxu0
        %v1749 = vadd.f32 %v1421, %v1748
        %v1750 = vpop.f32.mrb[0].mxu0
        %v1751 = vpop.f32.mrb[0].mxu0
        %v1752 = vadd.f32 %v1426, %v1751
        %v1753 = vpop.f32.mrb[0].mxu0
        %1754 = vmatprep.mubr.bf16.mxu0 %v1581
        %1755 = vmatmul.mubr.bf16.gmra.mrb[0].mxu0 %v1580
        %v1756 = vpop.f32.mrb[0].mxu0
        %v1757 = vadd.f32 %v1431, %v1756
        %v1758 = vpop.f32.mrb[0].mxu0
        %v1759 = vpop.f32.mrb[0].mxu0
        %v1760 = vadd.f32 %v1436, %v1759
        %v1761 = vpop.f32.mrb[0].mxu0
        %1762 = vmatprep.mubr.bf16.mxu0 %v1583
        %1763 = vmatmul.mubr.bf16.gmra.mrb[0].mxu0 %v1582
        %v1764 = vpop.f32.mrb[0].mxu0
        %v1765 = vadd.f32 %v1441, %v1764
        %v1766 = vpop.f32.mrb[0].mxu0
        %v1767 = vpop.f32.mrb[0].mxu0
        %v1768 = vadd.f32 %v1446, %v1767
        %v1769 = vpop.f32.mrb[0].mxu0
        %1770 = vmatprep.mubr.bf16.mxu0 %v1585
        %1771 = vmatmul.mubr.bf16.gmra.mrb[0].mxu0 %v1584
        %v1772 = vpop.f32.mrb[0].mxu0
        %v1773 = vadd.f32 %v1451, %v1772
        %v1774 = vpop.f32.mrb[0].mxu0
        %v1775 = vpop.f32.mrb[0].mxu0
        %v1776 = vadd.f32 %v1456, %v1775
        %v1777 = vpop.f32.mrb[0].mxu0
        %1778 = vdwg.mxu0
        %v1779 = vmax.f32 %v1653, 0.0
        %v1780 = vmax.f32 %v1656, 0.0
        %v1781 = vmax.f32 %v1661, 0.0
        %v1782 = vmax.f32 %v1664, 0.0
        %v1783 = vmax.f32 %v1669, 0.0
        %v1784 = vmax.f32 %v1672, 0.0
        %v1785 = vmax.f32 %v1677, 0.0
        %v1786 = vmax.f32 %v1680, 0.0
        %v1787 = vmax.f32 %v1685, 0.0
        %v1788 = vmax.f32 %v1688, 0.0
        %v1789 = vmax.f32 %v1693, 0.0
        %v1790 = vmax.f32 %v1696, 0.0
        %v1791 = vmax.f32 %v1701, 0.0
        %v1792 = vmax.f32 %v1704, 0.0
        %v1793 = vmax.f32 %v1709, 0.0
        %v1794 = vmax.f32 %v1712, 0.0
        %v1795 = vmax.f32 %v1717, 0.0
        %v1796 = vmax.f32 %v1720, 0.0
        %v1797 = vmax.f32 %v1725, 0.0
        %v1798 = vmax.f32 %v1728, 0.0
        %v1799 = vmax.f32 %v1733, 0.0
        %v1800 = vmax.f32 %v1736, 0.0
        %v1801 = vmax.f32 %v1741, 0.0
        %v1802 = vmax.f32 %v1744, 0.0
        %v1803 = vmax.f32 %v1749, 0.0
        %v1804 = vmax.f32 %v1752, 0.0
        %v1805 = vmax.f32 %v1757, 0.0
        %v1806 = vmax.f32 %v1760, 0.0
        %v1807 = vmax.f32 %v1765, 0.0
        %v1808 = vmax.f32 %v1768, 0.0
        %v1809 = vmax.f32 %v1773, 0.0
        %v1810 = vmax.f32 %v1776, 0.0
        %v1811 = vld [vmem:[%s5] sm:$0xff]
        %v1812 = vld [vmem:[%s5 + $0x8] sm:$0xff]
        %v1813 = vld [vmem:[%s5 + $0x10] sm:$0xff]
        %v1814 = vld [vmem:[%s5 + $0x18] sm:$0xff]
        %v1815 = vld [vmem:[%s5 + $0x20] sm:$0xff]
        %v1816 = vld [vmem:[%s5 + $0x28] sm:$0xff]
        %v1817 = vld [vmem:[%s5 + $0x30] sm:$0xff]
        %v1818 = vld [vmem:[%s5 + $0x38] sm:$0xff]
        %v1819 = vld [vmem:[%s5 + $0x40] sm:$0xff]
        %v1820 = vld [vmem:[%s5 + $0x48] sm:$0xff]
        %v1821 = vld [vmem:[%s5 + $0x50] sm:$0xff]
        %v1822 = vld [vmem:[%s5 + $0x58] sm:$0xff]
        %v1823 = vld [vmem:[%s5 + $0x60] sm:$0xff]
        %v1824 = vld [vmem:[%s5 + $0x68] sm:$0xff]
        %v1825 = vld [vmem:[%s5 + $0x70] sm:$0xff]
        %v1826 = vld [vmem:[%s5 + $0x78] sm:$0xff]
        %v1827 = vld [vmem:[%s5 + $0x80] sm:$0xff]
        %v1828 = vld [vmem:[%s5 + $0x88] sm:$0xff]
        %v1829 = vld [vmem:[%s5 + $0x90] sm:$0xff]
        %v1830 = vld [vmem:[%s5 + $0x98] sm:$0xff]
        %v1831 = vld [vmem:[%s5 + $0xa0] sm:$0xff]
        %v1832 = vld [vmem:[%s5 + $0xa8] sm:$0xff]
        %v1833 = vld [vmem:[%s5 + $0xb0] sm:$0xff]
        %v1834 = vld [vmem:[%s5 + $0xb8] sm:$0xff]
        %v1835 = vld [vmem:[%s5 + $0xc0] sm:$0xff]
        %v1836 = vld [vmem:[%s5 + $0xc8] sm:$0xff]
        %v1837 = vld [vmem:[%s5 + $0xd0] sm:$0xff]
        %v1838 = vld [vmem:[%s5 + $0xd8] sm:$0xff]
        %v1839 = vld [vmem:[%s5 + $0xe0] sm:$0xff]
        %v1840 = vld [vmem:[%s5 + $0xe8] sm:$0xff]
        %v1841 = vld [vmem:[%s5 + $0xf0] sm:$0xff]
        %v1842 = vld [vmem:[%s5 + $0xf8] sm:$0xff]
        %1844 = vset.pattern.permute.xlu0 0
        %1845 = vperm.xlu0 %1844, %v1811
        %v1846 = vpop.permute.xlu0 %1845
        %1849 = vset.pattern.permute.xlu0 0
        %1850 = vperm.xlu0 %1849, %v1812
        %v1851 = vpop.permute.xlu0 %1850
        %1854 = vset.pattern.permute.xlu0 0
        %1855 = vperm.xlu0 %1854, %v1813
        %v1856 = vpop.permute.xlu0 %1855
        %1859 = vset.pattern.permute.xlu0 0
        %1860 = vperm.xlu0 %1859, %v1814
        %v1861 = vpop.permute.xlu0 %1860
        %1864 = vset.pattern.permute.xlu0 0
        %1865 = vperm.xlu0 %1864, %v1815
        %v1866 = vpop.permute.xlu0 %1865
        %1869 = vset.pattern.permute.xlu0 0
        %1870 = vperm.xlu0 %1869, %v1816
        %v1871 = vpop.permute.xlu0 %1870
        %1874 = vset.pattern.permute.xlu0 0
        %1875 = vperm.xlu0 %1874, %v1817
        %v1876 = vpop.permute.xlu0 %1875
        %1879 = vset.pattern.permute.xlu0 0
        %1880 = vperm.xlu0 %1879, %v1818
        %v1881 = vpop.permute.xlu0 %1880
        %1884 = vset.pattern.permute.xlu0 0
        %1885 = vperm.xlu0 %1884, %v1819
        %v1886 = vpop.permute.xlu0 %1885
        %1889 = vset.pattern.permute.xlu0 0
        %1890 = vperm.xlu0 %1889, %v1820
        %v1891 = vpop.permute.xlu0 %1890
        %1894 = vset.pattern.permute.xlu0 0
        %1895 = vperm.xlu0 %1894, %v1821
        %v1896 = vpop.permute.xlu0 %1895
        %1899 = vset.pattern.permute.xlu0 0
        %1900 = vperm.xlu0 %1899, %v1822
        %v1901 = vpop.permute.xlu0 %1900
        %1904 = vset.pattern.permute.xlu0 0
        %1905 = vperm.xlu0 %1904, %v1823
        %v1906 = vpop.permute.xlu0 %1905
        %1909 = vset.pattern.permute.xlu0 0
        %1910 = vperm.xlu0 %1909, %v1824
        %v1911 = vpop.permute.xlu0 %1910
        %1914 = vset.pattern.permute.xlu0 0
        %1915 = vperm.xlu0 %1914, %v1825
        %v1916 = vpop.permute.xlu0 %1915
        %1919 = vset.pattern.permute.xlu0 0
        %1920 = vperm.xlu0 %1919, %v1826
        %v1921 = vpop.permute.xlu0 %1920
        %1924 = vset.pattern.permute.xlu0 0
        %1925 = vperm.xlu0 %1924, %v1827
        %v1926 = vpop.permute.xlu0 %1925
        %1929 = vset.pattern.permute.xlu0 0
        %1930 = vperm.xlu0 %1929, %v1828
        %v1931 = vpop.permute.xlu0 %1930
        %1934 = vset.pattern.permute.xlu0 0
        %1935 = vperm.xlu0 %1934, %v1829
        %v1936 = vpop.permute.xlu0 %1935
        %1939 = vset.pattern.permute.xlu0 0
        %1940 = vperm.xlu0 %1939, %v1830
        %v1941 = vpop.permute.xlu0 %1940
        %1944 = vset.pattern.permute.xlu0 0
        %1945 = vperm.xlu0 %1944, %v1831
        %v1946 = vpop.permute.xlu0 %1945
        %1949 = vset.pattern.permute.xlu0 0
        %1950 = vperm.xlu0 %1949, %v1832
        %v1951 = vpop.permute.xlu0 %1950
        %1954 = vset.pattern.permute.xlu0 0
        %1955 = vperm.xlu0 %1954, %v1833
        %v1956 = vpop.permute.xlu0 %1955
        %1959 = vset.pattern.permute.xlu0 0
        %1960 = vperm.xlu0 %1959, %v1834
        %v1961 = vpop.permute.xlu0 %1960
        %1964 = vset.pattern.permute.xlu0 0
        %1965 = vperm.xlu0 %1964, %v1835
        %v1966 = vpop.permute.xlu0 %1965
        %1969 = vset.pattern.permute.xlu0 0
        %1970 = vperm.xlu0 %1969, %v1836
        %v1971 = vpop.permute.xlu0 %1970
        %1974 = vset.pattern.permute.xlu0 0
        %1975 = vperm.xlu0 %1974, %v1837
        %v1976 = vpop.permute.xlu0 %1975
        %1979 = vset.pattern.permute.xlu0 0
        %1980 = vperm.xlu0 %1979, %v1838
        %v1981 = vpop.permute.xlu0 %1980
        %1984 = vset.pattern.permute.xlu0 0
        %1985 = vperm.xlu0 %1984, %v1839
        %v1986 = vpop.permute.xlu0 %1985
        %1989 = vset.pattern.permute.xlu0 0
        %1990 = vperm.xlu0 %1989, %v1840
        %v1991 = vpop.permute.xlu0 %1990
        %1994 = vset.pattern.permute.xlu0 0
        %1995 = vperm.xlu0 %1994, %v1841
        %v1996 = vpop.permute.xlu0 %1995
        %1999 = vset.pattern.permute.xlu0 0
        %2000 = vperm.xlu0 %1999, %v1842
        %v2001 = vpop.permute.xlu0 %2000
        %v2003 = vmul.f32 %v1779, %v1846
        %v2004 = vmul.f32 %v1780, %v1851
        %v2005 = vmul.f32 %v1781, %v1856
        %v2006 = vmul.f32 %v1782, %v1861
        %v2007 = vmul.f32 %v1783, %v1866
        %v2008 = vmul.f32 %v1784, %v1871
        %v2009 = vmul.f32 %v1785, %v1876
        %v2010 = vmul.f32 %v1786, %v1881
        %v2011 = vmul.f32 %v1787, %v1886
        %v2012 = vmul.f32 %v1788, %v1891
        %v2013 = vmul.f32 %v1789, %v1896
        %v2014 = vmul.f32 %v1790, %v1901
        %v2015 = vmul.f32 %v1791, %v1906
        %v2016 = vmul.f32 %v1792, %v1911
        %v2017 = vmul.f32 %v1793, %v1916
        %v2018 = vmul.f32 %v1794, %v1921
        %v2019 = vmul.f32 %v1795, %v1926
        %v2020 = vmul.f32 %v1796, %v1931
        %v2021 = vmul.f32 %v1797, %v1936
        %v2022 = vmul.f32 %v1798, %v1941
        %v2023 = vmul.f32 %v1799, %v1946
        %v2024 = vmul.f32 %v1800, %v1951
        %v2025 = vmul.f32 %v1801, %v1956
        %v2026 = vmul.f32 %v1802, %v1961
        %v2027 = vmul.f32 %v1803, %v1966
        %v2028 = vmul.f32 %v1804, %v1971
        %v2029 = vmul.f32 %v1805, %v1976
        %v2030 = vmul.f32 %v1806, %v1981
        %v2031 = vmul.f32 %v1807, %v1986
        %v2032 = vmul.f32 %v1808, %v1991
        %v2033 = vmul.f32 %v1809, %v1996
        %v2034 = vmul.f32 %v1810, %v2001
        %vm2035 = vcmask 523264
        %v2036 = vsel %vm2035, %v2003, 0.0
        %v2037 = vsel %vm2035, %v2004, 0.0
        %v2038 = vadd.f32 %v2036, %v2037
        %v2039 = vsel %vm2035, %v2005, 0.0
        %v2040 = vadd.f32 %v2038, %v2039
        %v2041 = vsel %vm2035, %v2006, 0.0
        %v2042 = vadd.f32 %v2040, %v2041
        %v2043 = vsel %vm2035, %v2007, 0.0
        %v2044 = vadd.f32 %v2042, %v2043
        %v2045 = vsel %vm2035, %v2008, 0.0
        %v2046 = vadd.f32 %v2044, %v2045
        %v2047 = vsel %vm2035, %v2009, 0.0
        %v2048 = vadd.f32 %v2046, %v2047
        %v2049 = vsel %vm2035, %v2010, 0.0
        %v2050 = vadd.f32 %v2048, %v2049
        %v2051 = vsel %vm2035, %v2011, 0.0
        %v2052 = vadd.f32 %v2050, %v2051
        %v2053 = vsel %vm2035, %v2012, 0.0
        %v2054 = vadd.f32 %v2052, %v2053
        %v2055 = vsel %vm2035, %v2013, 0.0
        %v2056 = vadd.f32 %v2054, %v2055
        %v2057 = vsel %vm2035, %v2014, 0.0
        %v2058 = vadd.f32 %v2056, %v2057
        %v2059 = vsel %vm2035, %v2015, 0.0
        %v2060 = vadd.f32 %v2058, %v2059
        %v2061 = vsel %vm2035, %v2016, 0.0
        %v2062 = vadd.f32 %v2060, %v2061
        %v2063 = vsel %vm2035, %v2017, 0.0
        %v2064 = vadd.f32 %v2062, %v2063
        %v2065 = vsel %vm2035, %v2018, 0.0
        %v2066 = vadd.f32 %v2064, %v2065
        %v2067 = vsel %vm2035, %v2019, 0.0
        %v2068 = vadd.f32 %v2066, %v2067
        %v2069 = vsel %vm2035, %v2020, 0.0
        %v2070 = vadd.f32 %v2068, %v2069
        %v2071 = vsel %vm2035, %v2021, 0.0
        %v2072 = vadd.f32 %v2070, %v2071
        %v2073 = vsel %vm2035, %v2022, 0.0
        %v2074 = vadd.f32 %v2072, %v2073
        %v2075 = vsel %vm2035, %v2023, 0.0
        %v2076 = vadd.f32 %v2074, %v2075
        %v2077 = vsel %vm2035, %v2024, 0.0
        %v2078 = vadd.f32 %v2076, %v2077
        %v2079 = vsel %vm2035, %v2025, 0.0
        %v2080 = vadd.f32 %v2078, %v2079
        %v2081 = vsel %vm2035, %v2026, 0.0
        %v2082 = vadd.f32 %v2080, %v2081
        %v2083 = vsel %vm2035, %v2027, 0.0
        %v2084 = vadd.f32 %v2082, %v2083
        %v2085 = vsel %vm2035, %v2028, 0.0
        %v2086 = vadd.f32 %v2084, %v2085
        %v2087 = vsel %vm2035, %v2029, 0.0
        %v2088 = vadd.f32 %v2086, %v2087
        %v2089 = vsel %vm2035, %v2030, 0.0
        %v2090 = vadd.f32 %v2088, %v2089
        %v2091 = vsel %vm2035, %v2031, 0.0
        %v2092 = vadd.f32 %v2090, %v2091
        %v2093 = vsel %vm2035, %v2032, 0.0
        %v2094 = vadd.f32 %v2092, %v2093
        %v2095 = vsel %vm2035, %v2033, 0.0
        %v2096 = vadd.f32 %v2094, %v2095
        %v2097 = vsel %vm2035, %v2034, 0.0
        %v2098 = vadd.f32 %v2096, %v2097
        %v2099 = vrot.slane %v2098, 4
        %v2100 = vadd.f32 %v2098, %v2099
        %v2101 = vrot.slane %v2100, 2
        %v2102 = vadd.f32 %v2100, %v2101
        %v2103 = vrot.slane %v2102, 1
        %v2104 = vadd.f32 %v2102, %v2103
        %v2105 = vld [vmem:[#allocation2] sm:$0x1]
        %2107 = vset.pattern.permute.xlu0 0
        %2108 = vperm.xlu0 %2107, %v2105
        %v2109 = vpop.permute.xlu0 %2108
        %v2111 = vlaneseq
        %v2112 = vshrl.u32 %v2111, 7
        %v2113 = vsub.s32 0, %v2112
        %v2114 = vrot.slane %v2109, %v2113
        %v2115 = vadd.f32 %v2104, %v2114
        %vm2116 = vcmask 516096
        %2117 = vst.msk [vmem:[%s322] sm:$0x1] %vm2116, %v2115
        %s2118 = sand.u32 %s209, 1
        %s2119 = scalar_lea.sflag [#allocation4], %s2118
        %s2120 = sand.u32 %s209, 1
        %s2121 = scalar_lea.vmem [#allocation3], %s2120
        // Predicated region
        $region49: #{pointnet2_wpos_forward.5} parent=47 // pred_check
          %p2122 = pneg %p219
        $region50: #{pointnet2_wpos_forward.5} parent=47 // pred_check_branch
          %2124 = sbr.rel (%p2122) target = $region52
        $region51: #{pointnet2_wpos_forward.5} parent=47 // pred_region
          %s2126 = ssub.s32 16, 16
          %2127 = vsyncadd %s2119, %s2126
          %s2128 = sadd.s32 %s28, %s27
          %s2129 = smul.addr %s2128, 16
          %s2130 = scalar_lea.hbm %s7, %s2129
          %s2132 = sshll.u32 %s2121, 4
          %s2133 = int_to_ptr.vmem [resolvable:$true] %s2132
          %2135 = dma.vmem_to_hbm [thread:$0]  %s2133, 16, %s2130, %s2119
        $region52: #{pointnet2_wpos_forward.5} parent=47 // pred_fallthru
          _
      $region48: #{pointnet2_wpos_forward.5} parent=5 // pred_fallthru
        _
      %p2136 = scmp.le.s32.totalorder 2, %s18
      // Predicated region
      $region53: #{pointnet2_wpos_forward.5} parent=5 // pred_check
        %p2137 = pneg %p2136
      $region54: #{pointnet2_wpos_forward.5} parent=5 // pred_check_branch
        %2139 = sbr.rel (%p2137) target = $region56
      $region55: #{pointnet2_wpos_forward.5} parent=5 // pred_region
        %s2140 = ssub.s32 %s18, 2
        // Predicated region
        $region57: #{pointnet2_wpos_forward.5} parent=55 // pred_check
          %p2141 = pneg %p225
        $region58: #{pointnet2_wpos_forward.5} parent=55 // pred_check_branch
          %2143 = sbr.rel (%p2141) target = $region60
        $region59: #{pointnet2_wpos_forward.5} parent=55 // pred_region
          %s2144 = sand.u32 %s210, 1
          %s2145 = scalar_lea.sflag [#allocation4], %s2144
          %s2146 = sand.u32 %s210, 1
          %s2147 = scalar_lea.vmem [#allocation3], %s2146
          %2148 = dma.done %s2145, 16
        $region60: #{pointnet2_wpos_forward.5} parent=55 // pred_fallthru
          _
      $region56: #{pointnet2_wpos_forward.5} parent=5 // pred_fallthru
        _
    $region6: #{pointnet2_wpos_forward.5} parent=1 // loop_footer
      %s22 = sadd.s32 1, %s18
    $region7: #{pointnet2_wpos_forward.5} parent=1 // loop_footer_branch
      %17 = sbr.rel target = $region3
    $region8: #{pointnet2_wpos_forward.5} parent=1 // loop_exit
      _
    %2149 = vsyncpa [#allocation4], 1
    %s2150 = scalar_lea.sflag [#allocation4], 1
    %2151 = vsyncpa %s2150, 1

</llo_original>
